<compile_context>
chip_gen: v7x
topology: tpu7x:2x2x1
jax: 0.10.0
libtpu: 0.0.40
codegen_flags: <defaults>
</compile_context>

<pallas_src>
import functools

import jax
import jax.numpy as jnp
from jax.experimental import pallas as pl
from jax.experimental.pallas import tpu as pltpu


_ROW_ALIGN = 128                       # row padding granularity (not the tile!)
_LANE = 128                            # lane-dense feature padding
_VMEM_LIMIT = 32 * 1024 * 1024         # safe on v5e/v6e/v7x
_X_RESIDENT_MAX_BYTES = 8 * 1024 * 1024  # keep x/h resident in VMEM below this


def _round_up(x, m):
    return ((x + m - 1) // m) * m


def _pick_tile(n, candidates):
    for c in candidates:
        if c <= n and n % c == 0:
            return c
    return n


def _l2norm_rows(x):
    ss = jnp.sum(x * x, axis=1, keepdims=True)
    # F.normalize: x / max(||x||, 1e-12) == x * rsqrt(max(||x||^2, 1e-24))
    return x * jax.lax.rsqrt(jnp.maximum(ss, 1e-24))


# ---------------------------------------------------------------------------
# Kernel 1a: preference rows -> per-row L2 normalize, dual f32/bf16 output
# ---------------------------------------------------------------------------
def _user_embed_kernel(pref_ref, xf_ref, xb_ref):
    xn = _l2norm_rows(pref_ref[...])
    xf_ref[...] = xn
    xb_ref[...] = xn.astype(jnp.bfloat16)


def _user_embed(pref_pad, *, t):
    u, d = pref_pad.shape
    return pl.pallas_call(
        _user_embed_kernel,
        out_shape=(jax.ShapeDtypeStruct((u, d), jnp.float32),
                   jax.ShapeDtypeStruct((u, d), jnp.bfloat16)),
        grid=(u // t,),
        in_specs=[pl.BlockSpec((t, d), lambda i: (i, 0))],
        out_specs=(pl.BlockSpec((t, d), lambda i: (i, 0)),
                   pl.BlockSpec((t, d), lambda i: (i, 0))),
        compiler_params=pltpu.CompilerParams(
            dimension_semantics=("parallel",),
            vmem_limit_bytes=_VMEM_LIMIT),
    )(pref_pad)


# ---------------------------------------------------------------------------
# Kernel 1b: item rows -> MLP_1(leaky_relu(MLP(f))) + L2 normalize, dual output
# ---------------------------------------------------------------------------
def _item_embed_kernel(feat_ref, w1_ref, b1_ref, w2_ref, b2_ref, xf_ref, xb_ref):
    h = jnp.dot(feat_ref[...].astype(jnp.bfloat16),
                w1_ref[...].astype(jnp.bfloat16),
                preferred_element_type=jnp.float32) + b1_ref[...]
    h = jnp.where(h > 0, h, 0.01 * h)          # F.leaky_relu default slope
    o = jnp.dot(h.astype(jnp.bfloat16),
                w2_ref[...].astype(jnp.bfloat16),
                preferred_element_type=jnp.float32) + b2_ref[...]
    o = _l2norm_rows(o)
    xf_ref[...] = o
    xb_ref[...] = o.astype(jnp.bfloat16)


def _item_embed(feat_pad, w1, b1, w2_pad, b2_pad, *, t):
    n, dim_feat = feat_pad.shape
    hid = w1.shape[1]
    d = w2_pad.shape[1]
    return pl.pallas_call(
        _item_embed_kernel,
        out_shape=(jax.ShapeDtypeStruct((n, d), jnp.float32),
                   jax.ShapeDtypeStruct((n, d), jnp.bfloat16)),
        grid=(n // t,),
        in_specs=[
            pl.BlockSpec((t, dim_feat), lambda i: (i, 0)),
            pl.BlockSpec((dim_feat, hid), lambda i: (0, 0)),
            pl.BlockSpec((1, hid), lambda i: (0, 0)),
            pl.BlockSpec((hid, d), lambda i: (0, 0)),
            pl.BlockSpec((1, d), lambda i: (0, 0)),
        ],
        out_specs=(pl.BlockSpec((t, d), lambda i: (i, 0)),
                   pl.BlockSpec((t, d), lambda i: (i, 0))),
        compiler_params=pltpu.CompilerParams(
            dimension_semantics=("parallel",),
            vmem_limit_bytes=_VMEM_LIMIT),
    )(feat_pad, w1, b1, w2_pad, b2_pad)


# ---------------------------------------------------------------------------
# Kernel 2: tiled graph propagation  o = A_norm @ x  (+ optional residuals)
#   - A streamed in (tm, tk) bf16 tiles over the k axis
#   - x resident in VMEM when it fits (constant index map + in-kernel pl.ds)
#   - accumulate directly into the f32 output block (no scratch)
# ---------------------------------------------------------------------------
def _prop1_kernel(a_ref, x_ref, hf_ref, hb_ref, *, tk, x_resident):
    k = pl.program_id(1)

    @pl.when(k == 0)
    def _():
        hf_ref[...] = jnp.zeros_like(hf_ref)

    if x_resident:
        xk = x_ref[pl.ds(pl.multiple_of(k * tk, tk), tk), :]
    else:
        xk = x_ref[...]
    hf_ref[...] += jnp.dot(a_ref[...], xk, preferred_element_type=jnp.float32)

    @pl.when(k == pl.num_programs(1) - 1)
    def _():
        hb_ref[...] = hf_ref[...].astype(jnp.bfloat16)   # bf16 copy for pass 2


def _prop2_kernel(a_ref, x_ref, r1_ref, r2_ref, o_ref, *, tk, x_resident):
    k = pl.program_id(1)

    @pl.when(k == 0)
    def _():
        o_ref[...] = jnp.zeros_like(o_ref)

    if x_resident:
        xk = x_ref[pl.ds(pl.multiple_of(k * tk, tk), tk), :]
    else:
        xk = x_ref[...]
    o_ref[...] += jnp.dot(a_ref[...], xk, preferred_element_type=jnp.float32)

    @pl.when(k == pl.num_programs(1) - 1)
    def _():
        o_ref[...] += r1_ref[...] + r2_ref[...]          # A@h + h + xn


def _x_spec(n, d, tk, x_resident):
    if x_resident:
        return pl.BlockSpec((n, d), lambda i, k: (0, 0))     # whole x resident
    return pl.BlockSpec((tk, d), lambda i, k: (k, 0))        # streamed fallback


def _propagate_1(a_bf16, x_bf16, *, tm, tk):
    n = a_bf16.shape[0]
    d = x_bf16.shape[1]
    x_resident = x_bf16.size * 2 <= _X_RESIDENT_MAX_BYTES
    kernel = functools.partial(_prop1_kernel, tk=tk, x_resident=x_resident)
    return pl.pallas_call(
        kernel,
        out_shape=(jax.ShapeDtypeStruct((n, d), jnp.float32),
                   jax.ShapeDtypeStruct((n, d), jnp.bfloat16)),
        grid=(n // tm, n // tk),
        in_specs=[
            pl.BlockSpec((tm, tk), lambda i, k: (i, k)),
            _x_spec(n, d, tk, x_resident),
        ],
        out_specs=(pl.BlockSpec((tm, d), lambda i, k: (i, 0)),
                   pl.BlockSpec((tm, d), lambda i, k: (i, 0))),
        compiler_params=pltpu.CompilerParams(
            dimension_semantics=("parallel", "arbitrary"),
            vmem_limit_bytes=_VMEM_LIMIT),
    )(a_bf16, x_bf16)


def _propagate_2(a_bf16, x_bf16, r1_f32, r2_f32, *, tm, tk):
    n = a_bf16.shape[0]
    d = x_bf16.shape[1]
    x_resident = x_bf16.size * 2 <= _X_RESIDENT_MAX_BYTES
    kernel = functools.partial(_prop2_kernel, tk=tk, x_resident=x_resident)
    return pl.pallas_call(
        kernel,
        out_shape=jax.ShapeDtypeStruct((n, d), jnp.float32),
        grid=(n // tm, n // tk),
        in_specs=[
            pl.BlockSpec((tm, tk), lambda i, k: (i, k)),
            _x_spec(n, d, tk, x_resident),
            pl.BlockSpec((tm, d), lambda i, k: (i, 0)),
            pl.BlockSpec((tm, d), lambda i, k: (i, 0)),
        ],
        out_specs=pl.BlockSpec((tm, d), lambda i, k: (i, 0)),
        compiler_params=pltpu.CompilerParams(
            dimension_semantics=("parallel", "arbitrary"),
            vmem_limit_bytes=_VMEM_LIMIT),
    )(a_bf16, x_bf16, r1_f32, r2_f32)


# ---------------------------------------------------------------------------
# Plain-JAX glue
# ---------------------------------------------------------------------------
def padded_dims(num_user, num_item):
    u_pad = _round_up(max(num_user, 1), _ROW_ALIGN)
    i_pad = _round_up(max(num_item, 1), _ROW_ALIGN)
    return u_pad, i_pad, u_pad + i_pad


def build_norm_adj(edge_index, num_user, u_pad, n_pad):
    """Dense normalized adjacency in the padded node space (bf16 output).

    Matches MMGCN Base_gcn semantics: self-loops removed, aggr='add' with
    norm = deg^{-1/2}[src] * deg^{-1/2}[dst], degree from SOURCE endpoints
    (PyG `degree(row)`), duplicate edges accumulate.  Depends only on
    edge_index + static sizes, so call this ONCE and reuse across forwards.
    """
    src = edge_index[0].astype(jnp.int32)
    dst = edge_index[1].astype(jnp.int32)
    # remap item ids (>= num_user) into the tile-padded node space
    src = jnp.where(src >= num_user, src - num_user + u_pad, src)
    dst = jnp.where(dst >= num_user, dst - num_user + u_pad, dst)
    keep = (src != dst).astype(jnp.float32)          # remove self-loops
    deg = jnp.zeros((n_pad,), jnp.float32).at[src].add(keep)
    dinv = jnp.where(deg > 0, jax.lax.rsqrt(deg), 0.0)
    w = keep * dinv[src] * dinv[dst]
    a = jnp.zeros((n_pad, n_pad), jnp.float32).at[dst, src].add(w)
    return a.astype(jnp.bfloat16)


def gcn_module_forward(params, edge_index_drop, edge_index, features,
                       a_norm=None):
    # edge_index_drop (dropout path) is unused in the reference forward pass.
    del edge_index_drop
    num_user, dim_latent = params["preference"].shape
    num_item, dim_feat = features.shape
    hid = params["w1"].shape[1]

    u_pad, i_pad, n_pad = padded_dims(num_user, num_item)
    d_pad = _round_up(dim_latent, _LANE)       # lane-dense feature dim

    # zero-pad parameters / features into aligned, lane-dense buffers
    pref_pad = (jnp.zeros((u_pad, d_pad), jnp.float32)
                .at[:num_user, :dim_latent].set(params["preference"]))
    feat_pad = (jnp.zeros((i_pad, dim_feat), jnp.float32)
                .at[:num_item].set(features))
    w2_pad = (jnp.zeros((hid, d_pad), jnp.float32)
              .at[:, :dim_latent].set(params["w2"]))
    b2_pad = (jnp.zeros((1, d_pad), jnp.float32)
              .at[:, :dim_latent].set(params["b2"]))

    # x = normalize(cat([preference, MLP_1(leaky_relu(MLP(features)))]))
    tu = _pick_tile(u_pad, (1024, 512, 256, 128))
    ti = _pick_tile(i_pad, (512, 256, 128))
    xu_f, xu_b = _user_embed(pref_pad, t=tu)
    xi_f, xi_b = _item_embed(feat_pad, params["w1"], params["b1"],
                             w2_pad, b2_pad, t=ti)
    xn_f = jnp.concatenate([xu_f, xi_f], axis=0)
    xn_b = jnp.concatenate([xu_b, xi_b], axis=0)

    if a_norm is None:   # prefer precomputing this once outside the forward
        a_norm = build_norm_adj(edge_index, num_user, u_pad, n_pad)

    # graph propagation: stream bf16 A twice (MXU bf16 inputs, f32 accumulation)
    tm = _pick_tile(n_pad, (512, 256, 128))
    tk = _pick_tile(n_pad, (2048, 1024, 512, 256, 128))
    h_f, h_b = _propagate_1(a_norm, xn_b, tm=tm, tk=tk)               # A @ xn
    x_hat_pad = _propagate_2(a_norm, h_b, h_f, xn_f, tm=tm, tk=tk)    # A@h + h + xn

    # un-pad back to (num_user + num_item, dim_latent)
    x_hat = jnp.concatenate(
        [x_hat_pad[:num_user, :dim_latent],
         x_hat_pad[u_pad:u_pad + num_item, :dim_latent]], axis=0)
    return x_hat, params["preference"]


# ---------------------------------------------------------------------------
# main
# ---------------------------------------------------------------------------
if __name__ == "__main__":
    num_user = 8
    num_item = 8
    dim_feat = 64
    dim_latent = 32

    key = jax.random.PRNGKey(0)
    k_pref, k_w1, k_b1, k_w2, k_b2 = jax.random.split(key, 5)

    # preference: xavier_normal_, gain=1 -> std = sqrt(2 / (fan_in + fan_out))
    pref_std = jnp.sqrt(2.0 / (num_user + dim_latent))
    preference = pref_std * jax.random.normal(k_pref, (num_user, dim_latent),
                                              jnp.float32)

    # MLP: Linear(dim_feat, 4*dim_latent); MLP_1: Linear(4*dim_latent, dim_latent)
    # (deterministic synthetic init; weights stored pre-transposed as (in, out))
    w1 = 0.05 * jax.random.normal(k_w1, (dim_feat, 4 * dim_latent), jnp.float32)
    b1 = 0.01 * jax.random.normal(k_b1, (1, 4 * dim_latent), jnp.float32)
    w2 = 0.05 * jax.random.normal(k_w2, (4 * dim_latent, dim_latent), jnp.float32)
    b2 = 0.01 * jax.random.normal(k_b2, (1, dim_latent), jnp.float32)

    params = {"preference": preference, "w1": w1, "b1": b1, "w2": w2, "b2": b2}

    # item features (rows = items)
    features = jax.random.normal(jax.random.PRNGKey(42),
                                 (num_item, dim_feat), jnp.float32)

    # deterministic bipartite user-item graph (global node ids: users first,
    # then items offset by num_user), symmetric edges
    users = jnp.arange(num_user)
    items_a = num_user + (jnp.arange(num_user) % num_item)
    items_b = num_user + ((jnp.arange(num_user) + 1) % num_item)
    src = jnp.concatenate([users, users, items_a, items_b])
    dst = jnp.concatenate([items_a, items_b, users, users])
    edge_index = jnp.stack([src, dst]).astype(jnp.int32)      # (2, E)
    edge_index_drop = edge_index                               # unused in fwd

    # Hoist the normalized-adjacency build out of the per-call forward: it only
    # depends on edge_index + static sizes, so build once (bf16) and reuse.
    u_pad, i_pad, n_pad = padded_dims(num_user, num_item)
    a_norm = build_norm_adj(edge_index, num_user, u_pad, n_pad)
    a_norm = jax.block_until_ready(a_norm)

    fwd = jax.jit(gcn_module_forward)
    x_hat, pref_out = fwd(params, edge_index_drop, edge_index, features, a_norm)
    jax.block_until_ready(x_hat)
    jax.block_until_ready(pref_out)

    assert x_hat.shape == (num_user + num_item, dim_latent)
    assert pref_out.shape == (num_user, dim_latent)
    assert bool(jnp.all(jnp.isfinite(x_hat)))
    print("KERNEL_OK")
</pallas_src>

<mosaic_0001>
module attributes {stable_mosaic.version = 11 : i64} {
  func.func @_item_embed_kernel(%arg0: i32, %arg1: memref<128x64xf32, #tpu.memory_space<vmem>>, %arg2: memref<64x128xf32, #tpu.memory_space<vmem>>, %arg3: memref<1x128xf32, #tpu.memory_space<vmem>>, %arg4: memref<128x128xf32, #tpu.memory_space<vmem>>, %arg5: memref<1x128xf32, #tpu.memory_space<vmem>>, %arg6: memref<128x128xf32, #tpu.memory_space<vmem>>, %arg7: memref<128x128xbf16, #tpu.memory_space<vmem>>) attributes {dimension_semantics = [#tpu.dimension_semantics<parallel>], iteration_bounds = array<i64: 1>, scalar_prefetch = 0 : i64, scratch_operands = 0 : i64, tpu.core_type = #tpu.core_type<tc>, window_params = [{transform_indices = @transform_0, window_bounds = array<i64: 128, 64>}, {pipeline_mode = #tpu.pipeline_mode<synchronous>, transform_indices = @transform_1, window_bounds = array<i64: 64, 128>}, {pipeline_mode = #tpu.pipeline_mode<synchronous>, transform_indices = @transform_2, window_bounds = array<i64: 1, 128>}, {pipeline_mode = #tpu.pipeline_mode<synchronous>, transform_indices = @transform_3, window_bounds = array<i64: 128, 128>}, {pipeline_mode = #tpu.pipeline_mode<synchronous>, transform_indices = @transform_4, window_bounds = array<i64: 1, 128>}, {transform_indices = @transform_5, window_bounds = array<i64: 128, 128>}, {transform_indices = @transform_6, window_bounds = array<i64: 128, 128>}]} {
    %c0 = arith.constant 0 : index
    %c0_0 = arith.constant 0 : index
    %0 = vector.load %arg1[%c0, %c0_0] : memref<128x64xf32, #tpu.memory_space<vmem>>, vector<128x64xf32>
    %1 = arith.truncf %0 : vector<128x64xf32> to vector<128x64xbf16>
    %c0_1 = arith.constant 0 : index
    %c0_2 = arith.constant 0 : index
    %2 = vector.load %arg2[%c0_1, %c0_2] : memref<64x128xf32, #tpu.memory_space<vmem>>, vector<64x128xf32>
    %3 = arith.truncf %2 : vector<64x128xf32> to vector<64x128xbf16>
    %cst = arith.constant dense<0.000000e+00> : vector<128x128xf32>
    %4 = tpu.matmul %1, %3, %cst {dimension_numbers = #tpu.dot_dimension_numbers<[1], [0], [0], [1], [0, 0, 1, 1], [], []>} : vector<128x64xbf16>, vector<64x128xbf16>, vector<128x128xf32> -> vector<128x128xf32>
    %c0_3 = arith.constant 0 : index
    %c0_4 = arith.constant 0 : index
    %5 = vector.load %arg3[%c0_3, %c0_4] : memref<1x128xf32, #tpu.memory_space<vmem>>, vector<1x128xf32>
    %6 = vector.broadcast %5 : vector<1x128xf32> to vector<128x128xf32>
    %7 = arith.addf %4, %6 : vector<128x128xf32>
    %cst_5 = arith.constant 0.000000e+00 : f32
    %8 = vector.broadcast %cst_5 : f32 to vector<128x128xf32>
    %9 = arith.cmpf ogt, %7, %8 : vector<128x128xf32>
    %cst_6 = arith.constant 0.00999999977 : f32
    %10 = vector.broadcast %cst_6 : f32 to vector<128x128xf32>
    %11 = arith.mulf %10, %7 : vector<128x128xf32>
    %12 = arith.select %9, %7, %11 : vector<128x128xi1>, vector<128x128xf32>
    %13 = arith.truncf %12 : vector<128x128xf32> to vector<128x128xbf16>
    %c0_7 = arith.constant 0 : index
    %c0_8 = arith.constant 0 : index
    %14 = vector.load %arg4[%c0_7, %c0_8] : memref<128x128xf32, #tpu.memory_space<vmem>>, vector<128x128xf32>
    %15 = arith.truncf %14 : vector<128x128xf32> to vector<128x128xbf16>
    %cst_9 = arith.constant dense<0.000000e+00> : vector<128x128xf32>
    %16 = tpu.matmul %13, %15, %cst_9 {dimension_numbers = #tpu.dot_dimension_numbers<[1], [0], [0], [1], [0, 0, 1, 1], [], []>} : vector<128x128xbf16>, vector<128x128xbf16>, vector<128x128xf32> -> vector<128x128xf32>
    %c0_10 = arith.constant 0 : index
    %c0_11 = arith.constant 0 : index
    %17 = vector.load %arg5[%c0_10, %c0_11] : memref<1x128xf32, #tpu.memory_space<vmem>>, vector<1x128xf32>
    %18 = vector.broadcast %17 : vector<1x128xf32> to vector<128x128xf32>
    %19 = arith.addf %16, %18 : vector<128x128xf32>
    %20 = arith.mulf %19, %19 : vector<128x128xf32>
    %cst_12 = arith.constant dense<0.000000e+00> : vector<128xf32>
    %21 = vector.multi_reduction <add>, %20, %cst_12 [1] : vector<128x128xf32> to vector<128xf32>
    %22 = vector.shape_cast %21 : vector<128xf32> to vector<128x1xf32>
    %cst_13 = arith.constant 1.000000e-24 : f32
    %23 = vector.broadcast %cst_13 : f32 to vector<128x1xf32>
    %24 = arith.maximumf %22, %23 : vector<128x1xf32>
    %25 = math.rsqrt %24 : vector<128x1xf32>
    %26 = vector.broadcast %25 : vector<128x1xf32> to vector<128x128xf32>
    %27 = arith.mulf %19, %26 : vector<128x128xf32>
    %c0_14 = arith.constant 0 : index
    %c0_15 = arith.constant 0 : index
    %28 = vector.load %arg6[%c0_14, %c0_15] : memref<128x128xf32, #tpu.memory_space<vmem>>, vector<128x128xf32>
    tpu.vector_store %arg6[%c0_14, %c0_15], %27 {strides = array<i32>} : memref<128x128xf32, #tpu.memory_space<vmem>>, vector<128x128xf32>,
    %29 = arith.truncf %27 : vector<128x128xf32> to vector<128x128xbf16>
    %c0_16 = arith.constant 0 : index
    %c0_17 = arith.constant 0 : index
    %30 = vector.load %arg7[%c0_16, %c0_17] : memref<128x128xbf16, #tpu.memory_space<vmem>>, vector<128x128xbf16>
    tpu.vector_store %arg7[%c0_16, %c0_17], %29 {strides = array<i32>} : memref<128x128xbf16, #tpu.memory_space<vmem>>, vector<128x128xbf16>,
    return
  }
  func.func @transform_0(%arg0: i32) -> (i32, i32) {
    %c0_i32 = arith.constant 0 : i32
    %c0_i32_0 = arith.constant 0 : i32
    return %arg0, %c0_i32 : i32, i32
  }
  func.func @transform_1(%arg0: i32) -> (i32, i32) {
    %c0_i32 = arith.constant 0 : i32
    %c0_i32_0 = arith.constant 0 : i32
    %c0_i32_1 = arith.constant 0 : i32
    return %c0_i32, %c0_i32_0 : i32, i32
  }
  func.func @transform_2(%arg0: i32) -> (i32, i32) {
    %c0_i32 = arith.constant 0 : i32
    %c0_i32_0 = arith.constant 0 : i32
    %c0_i32_1 = arith.constant 0 : i32
    return %c0_i32, %c0_i32_0 : i32, i32
  }
  func.func @transform_3(%arg0: i32) -> (i32, i32) {
    %c0_i32 = arith.constant 0 : i32
    %c0_i32_0 = arith.constant 0 : i32
    %c0_i32_1 = arith.constant 0 : i32
    return %c0_i32, %c0_i32_0 : i32, i32
  }
  func.func @transform_4(%arg0: i32) -> (i32, i32) {
    %c0_i32 = arith.constant 0 : i32
    %c0_i32_0 = arith.constant 0 : i32
    %c0_i32_1 = arith.constant 0 : i32
    return %c0_i32, %c0_i32_0 : i32, i32
  }
  func.func @transform_5(%arg0: i32) -> (i32, i32) {
    %c0_i32 = arith.constant 0 : i32
    %c0_i32_0 = arith.constant 0 : i32
    return %arg0, %c0_i32 : i32, i32
  }
  func.func @transform_6(%arg0: i32) -> (i32, i32) {
    %c0_i32 = arith.constant 0 : i32
    %c0_i32_0 = arith.constant 0 : i32
    return %arg0, %c0_i32 : i32, i32
  }
}

module attributes {stable_mosaic.version = 11 : i64} {
  func.func @_prop1_kernel(%arg0: i32, %arg1: i32, %arg2: memref<256x256xbf16, #tpu.memory_space<vmem>>, %arg3: memref<256x128xbf16, #tpu.memory_space<vmem>>, %arg4: memref<256x128xf32, #tpu.memory_space<vmem>>, %arg5: memref<256x128xbf16, #tpu.memory_space<vmem>>) attributes {dimension_semantics = [#tpu.dimension_semantics<parallel>, #tpu.dimension_semantics<arbitrary>], iteration_bounds = array<i64: 1, 1>, scalar_prefetch = 0 : i64, scratch_operands = 0 : i64, tpu.core_type = #tpu.core_type<tc>, window_params = [{transform_indices = @transform_0, window_bounds = array<i64: 256, 256>}, {pipeline_mode = #tpu.pipeline_mode<synchronous>, transform_indices = @transform_1, window_bounds = array<i64: 256, 128>}, {transform_indices = @transform_2, window_bounds = array<i64: 256, 128>}, {transform_indices = @transform_3, window_bounds = array<i64: 256, 128>}]} {
    %c0_i32 = arith.constant 0 : i32
    %0 = arith.cmpi eq, %arg1, %c0_i32 : i32
    %1 = arith.extui %0 : i1 to i32
    %c0_i32_0 = arith.constant 0 : i32
    %2 = arith.cmpi ne, %1, %c0_i32_0 : i32
    scf.if %2 {
      %cst_9 = arith.constant 0.000000e+00 : f32
      %15 = vector.broadcast %cst_9 : f32 to vector<256x128xf32>
      %c0_10 = arith.constant 0 : index
      %c0_11 = arith.constant 0 : index
      %16 = vector.load %arg4[%c0_10, %c0_11] : memref<256x128xf32, #tpu.memory_space<vmem>>, vector<256x128xf32>
      tpu.vector_store %arg4[%c0_10, %c0_11], %15 {strides = array<i32>} : memref<256x128xf32, #tpu.memory_space<vmem>>, vector<256x128xf32>,
    } else {
    }
    %c256_i32 = arith.constant 256 : i32
    %3 = arith.muli %arg1, %c256_i32 : i32
    %4 = tpu.assume_multiple %3, 256 : i32
    %5 = arith.index_cast %4 : i32 to index
    %c0 = arith.constant 0 : index
    %6 = vector.load %arg3[%5, %c0] : memref<256x128xbf16, #tpu.memory_space<vmem>>, vector<256x128xbf16>
    %c0_1 = arith.constant 0 : index
    %c0_2 = arith.constant 0 : index
    %7 = vector.load %arg4[%c0_1, %c0_2] : memref<256x128xf32, #tpu.memory_space<vmem>>, vector<256x128xf32>
    %c0_3 = arith.constant 0 : index
    %c0_4 = arith.constant 0 : index
    %8 = vector.load %arg2[%c0_3, %c0_4] : memref<256x256xbf16, #tpu.memory_space<vmem>>, vector<256x256xbf16>
    %cst = arith.constant dense<0.000000e+00> : vector<256x128xf32>
    %9 = tpu.matmul %8, %6, %cst {dimension_numbers = #tpu.dot_dimension_numbers<[1], [0], [0], [1], [0, 0, 1, 1], [], []>} : vector<256x256xbf16>, vector<256x128xbf16>, vector<256x128xf32> -> vector<256x128xf32>
    %10 = arith.addf %7, %9 : vector<256x128xf32>
    %c0_5 = arith.constant 0 : index
    %c0_6 = arith.constant 0 : index
    %11 = vector.load %arg4[%c0_5, %c0_6] : memref<256x128xf32, #tpu.memory_space<vmem>>, vector<256x128xf32>
    tpu.vector_store %arg4[%c0_5, %c0_6], %10 {strides = array<i32>} : memref<256x128xf32, #tpu.memory_space<vmem>>, vector<256x128xf32>,
    %c0_i32_7 = arith.constant 0 : i32
    %12 = arith.cmpi eq, %arg1, %c0_i32_7 : i32
    %13 = arith.extui %12 : i1 to i32
    %c0_i32_8 = arith.constant 0 : i32
    %14 = arith.cmpi ne, %13, %c0_i32_8 : i32
    scf.if %14 {
      %c0_9 = arith.constant 0 : index
      %c0_10 = arith.constant 0 : index
      %15 = vector.load %arg4[%c0_9, %c0_10] : memref<256x128xf32, #tpu.memory_space<vmem>>, vector<256x128xf32>
      %16 = arith.truncf %15 : vector<256x128xf32> to vector<256x128xbf16>
      %c0_11 = arith.constant 0 : index
      %c0_12 = arith.constant 0 : index
      %17 = vector.load %arg5[%c0_11, %c0_12] : memref<256x128xbf16, #tpu.memory_space<vmem>>, vector<256x128xbf16>
      tpu.vector_store %arg5[%c0_11, %c0_12], %16 {strides = array<i32>} : memref<256x128xbf16, #tpu.memory_space<vmem>>, vector<256x128xbf16>,
    } else {
    }
    return
  }
  func.func @transform_0(%arg0: i32, %arg1: i32) -> (i32, i32) {
    %c0_i32 = arith.constant 0 : i32
    return %arg0, %arg1 : i32, i32
  }
  func.func @transform_1(%arg0: i32, %arg1: i32) -> (i32, i32) {
    %c0_i32 = arith.constant 0 : i32
    %c0_i32_0 = arith.constant 0 : i32
    %c0_i32_1 = arith.constant 0 : i32
    return %c0_i32, %c0_i32_0 : i32, i32
  }
  func.func @transform_2(%arg0: i32, %arg1: i32) -> (i32, i32) {
    %c0_i32 = arith.constant 0 : i32
    %c0_i32_0 = arith.constant 0 : i32
    return %arg0, %c0_i32 : i32, i32
  }
  func.func @transform_3(%arg0: i32, %arg1: i32) -> (i32, i32) {
    %c0_i32 = arith.constant 0 : i32
    %c0_i32_0 = arith.constant 0 : i32
    return %arg0, %c0_i32 : i32, i32
  }
}

module attributes {stable_mosaic.version = 11 : i64} {
  func.func @_user_embed_kernel(%arg0: i32, %arg1: memref<128x128xf32, #tpu.memory_space<vmem>>, %arg2: memref<128x128xf32, #tpu.memory_space<vmem>>, %arg3: memref<128x128xbf16, #tpu.memory_space<vmem>>) attributes {dimension_semantics = [#tpu.dimension_semantics<parallel>], iteration_bounds = array<i64: 1>, scalar_prefetch = 0 : i64, scratch_operands = 0 : i64, tpu.core_type = #tpu.core_type<tc>, window_params = [{transform_indices = @transform_0, window_bounds = array<i64: 128, 128>}, {transform_indices = @transform_1, window_bounds = array<i64: 128, 128>}, {transform_indices = @transform_2, window_bounds = array<i64: 128, 128>}]} {
    %c0 = arith.constant 0 : index
    %c0_0 = arith.constant 0 : index
    %0 = vector.load %arg1[%c0, %c0_0] : memref<128x128xf32, #tpu.memory_space<vmem>>, vector<128x128xf32>
    %1 = arith.mulf %0, %0 : vector<128x128xf32>
    %cst = arith.constant dense<0.000000e+00> : vector<128xf32>
    %2 = vector.multi_reduction <add>, %1, %cst [1] : vector<128x128xf32> to vector<128xf32>
    %3 = vector.shape_cast %2 : vector<128xf32> to vector<128x1xf32>
    %cst_1 = arith.constant 1.000000e-24 : f32
    %4 = vector.broadcast %cst_1 : f32 to vector<128x1xf32>
    %5 = arith.maximumf %3, %4 : vector<128x1xf32>
    %6 = math.rsqrt %5 : vector<128x1xf32>
    %7 = vector.broadcast %6 : vector<128x1xf32> to vector<128x128xf32>
    %8 = arith.mulf %0, %7 : vector<128x128xf32>
    %c0_2 = arith.constant 0 : index
    %c0_3 = arith.constant 0 : index
    %9 = vector.load %arg2[%c0_2, %c0_3] : memref<128x128xf32, #tpu.memory_space<vmem>>, vector<128x128xf32>
    tpu.vector_store %arg2[%c0_2, %c0_3], %8 {strides = array<i32>} : memref<128x128xf32, #tpu.memory_space<vmem>>, vector<128x128xf32>,
    %10 = arith.truncf %8 : vector<128x128xf32> to vector<128x128xbf16>
    %c0_4 = arith.constant 0 : index
    %c0_5 = arith.constant 0 : index
    %11 = vector.load %arg3[%c0_4, %c0_5] : memref<128x128xbf16, #tpu.memory_space<vmem>>, vector<128x128xbf16>
    tpu.vector_store %arg3[%c0_4, %c0_5], %10 {strides = array<i32>} : memref<128x128xbf16, #tpu.memory_space<vmem>>, vector<128x128xbf16>,
    return
  }
  func.func @transform_0(%arg0: i32) -> (i32, i32) {
    %c0_i32 = arith.constant 0 : i32
    %c0_i32_0 = arith.constant 0 : i32
    return %arg0, %c0_i32 : i32, i32
  }
  func.func @transform_1(%arg0: i32) -> (i32, i32) {
    %c0_i32 = arith.constant 0 : i32
    %c0_i32_0 = arith.constant 0 : i32
    return %arg0, %c0_i32 : i32, i32
  }
  func.func @transform_2(%arg0: i32) -> (i32, i32) {
    %c0_i32 = arith.constant 0 : i32
    %c0_i32_0 = arith.constant 0 : i32
    return %arg0, %c0_i32 : i32, i32
  }
}

module attributes {stable_mosaic.version = 11 : i64} {
  func.func @_prop2_kernel(%arg0: i32, %arg1: i32, %arg2: memref<256x256xbf16, #tpu.memory_space<vmem>>, %arg3: memref<256x128xbf16, #tpu.memory_space<vmem>>, %arg4: memref<256x128xf32, #tpu.memory_space<vmem>>, %arg5: memref<256x128xf32, #tpu.memory_space<vmem>>, %arg6: memref<256x128xf32, #tpu.memory_space<vmem>>) attributes {dimension_semantics = [#tpu.dimension_semantics<parallel>, #tpu.dimension_semantics<arbitrary>], iteration_bounds = array<i64: 1, 1>, scalar_prefetch = 0 : i64, scratch_operands = 0 : i64, tpu.core_type = #tpu.core_type<tc>, window_params = [{transform_indices = @transform_0, window_bounds = array<i64: 256, 256>}, {pipeline_mode = #tpu.pipeline_mode<synchronous>, transform_indices = @transform_1, window_bounds = array<i64: 256, 128>}, {transform_indices = @transform_2, window_bounds = array<i64: 256, 128>}, {transform_indices = @transform_3, window_bounds = array<i64: 256, 128>}, {transform_indices = @transform_4, window_bounds = array<i64: 256, 128>}]} {
    %c0_i32 = arith.constant 0 : i32
    %0 = arith.cmpi eq, %arg1, %c0_i32 : i32
    %1 = arith.extui %0 : i1 to i32
    %c0_i32_0 = arith.constant 0 : i32
    %2 = arith.cmpi ne, %1, %c0_i32_0 : i32
    scf.if %2 {
      %cst_9 = arith.constant 0.000000e+00 : f32
      %15 = vector.broadcast %cst_9 : f32 to vector<256x128xf32>
      %c0_10 = arith.constant 0 : index
      %c0_11 = arith.constant 0 : index
      %16 = vector.load %arg6[%c0_10, %c0_11] : memref<256x128xf32, #tpu.memory_space<vmem>>, vector<256x128xf32>
      tpu.vector_store %arg6[%c0_10, %c0_11], %15 {strides = array<i32>} : memref<256x128xf32, #tpu.memory_space<vmem>>, vector<256x128xf32>,
    } else {
    }
    %c256_i32 = arith.constant 256 : i32
    %3 = arith.muli %arg1, %c256_i32 : i32
    %4 = tpu.assume_multiple %3, 256 : i32
    %5 = arith.index_cast %4 : i32 to index
    %c0 = arith.constant 0 : index
    %6 = vector.load %arg3[%5, %c0] : memref<256x128xbf16, #tpu.memory_space<vmem>>, vector<256x128xbf16>
    %c0_1 = arith.constant 0 : index
    %c0_2 = arith.constant 0 : index
    %7 = vector.load %arg6[%c0_1, %c0_2] : memref<256x128xf32, #tpu.memory_space<vmem>>, vector<256x128xf32>
    %c0_3 = arith.constant 0 : index
    %c0_4 = arith.constant 0 : index
    %8 = vector.load %arg2[%c0_3, %c0_4] : memref<256x256xbf16, #tpu.memory_space<vmem>>, vector<256x256xbf16>
    %cst = arith.constant dense<0.000000e+00> : vector<256x128xf32>
    %9 = tpu.matmul %8, %6, %cst {dimension_numbers = #tpu.dot_dimension_numbers<[1], [0], [0], [1], [0, 0, 1, 1], [], []>} : vector<256x256xbf16>, vector<256x128xbf16>, vector<256x128xf32> -> vector<256x128xf32>
    %10 = arith.addf %7, %9 : vector<256x128xf32>
    %c0_5 = arith.constant 0 : index
    %c0_6 = arith.constant 0 : index
    %11 = vector.load %arg6[%c0_5, %c0_6] : memref<256x128xf32, #tpu.memory_space<vmem>>, vector<256x128xf32>
    tpu.vector_store %arg6[%c0_5, %c0_6], %10 {strides = array<i32>} : memref<256x128xf32, #tpu.memory_space<vmem>>, vector<256x128xf32>,
    %c0_i32_7 = arith.constant 0 : i32
    %12 = arith.cmpi eq, %arg1, %c0_i32_7 : i32
    %13 = arith.extui %12 : i1 to i32
    %c0_i32_8 = arith.constant 0 : i32
    %14 = arith.cmpi ne, %13, %c0_i32_8 : i32
    scf.if %14 {
      %c0_9 = arith.constant 0 : index
      %c0_10 = arith.constant 0 : index
      %15 = vector.load %arg6[%c0_9, %c0_10] : memref<256x128xf32, #tpu.memory_space<vmem>>, vector<256x128xf32>
      %c0_11 = arith.constant 0 : index
      %c0_12 = arith.constant 0 : index
      %16 = vector.load %arg4[%c0_11, %c0_12] : memref<256x128xf32, #tpu.memory_space<vmem>>, vector<256x128xf32>
      %c0_13 = arith.constant 0 : index
      %c0_14 = arith.constant 0 : index
      %17 = vector.load %arg5[%c0_13, %c0_14] : memref<256x128xf32, #tpu.memory_space<vmem>>, vector<256x128xf32>
      %18 = arith.addf %16, %17 : vector<256x128xf32>
      %19 = arith.addf %15, %18 : vector<256x128xf32>
      %c0_15 = arith.constant 0 : index
      %c0_16 = arith.constant 0 : index
      %20 = vector.load %arg6[%c0_15, %c0_16] : memref<256x128xf32, #tpu.memory_space<vmem>>, vector<256x128xf32>
      tpu.vector_store %arg6[%c0_15, %c0_16], %19 {strides = array<i32>} : memref<256x128xf32, #tpu.memory_space<vmem>>, vector<256x128xf32>,
    } else {
    }
    return
  }
  func.func @transform_0(%arg0: i32, %arg1: i32) -> (i32, i32) {
    %c0_i32 = arith.constant 0 : i32
    return %arg0, %arg1 : i32, i32
  }
  func.func @transform_1(%arg0: i32, %arg1: i32) -> (i32, i32) {
    %c0_i32 = arith.constant 0 : i32
    %c0_i32_0 = arith.constant 0 : i32
    %c0_i32_1 = arith.constant 0 : i32
    return %c0_i32, %c0_i32_0 : i32, i32
  }
  func.func @transform_2(%arg0: i32, %arg1: i32) -> (i32, i32) {
    %c0_i32 = arith.constant 0 : i32
    %c0_i32_0 = arith.constant 0 : i32
    return %arg0, %c0_i32 : i32, i32
  }
  func.func @transform_3(%arg0: i32, %arg1: i32) -> (i32, i32) {
    %c0_i32 = arith.constant 0 : i32
    %c0_i32_0 = arith.constant 0 : i32
    return %arg0, %c0_i32 : i32, i32
  }
  func.func @transform_4(%arg0: i32, %arg1: i32) -> (i32, i32) {
    %c0_i32 = arith.constant 0 : i32
    %c0_i32_0 = arith.constant 0 : i32
    return %arg0, %c0_i32 : i32, i32
  }
}

</mosaic_0001>

<llo_original>
// kernel: gcn_module_forward.4
$region0: #{gcn_module_forward.4}
  #allocation0 [shape = 'u32[]', space=smem, size = 0x4, offset = 0x4, fixed_abs, tag = 'smem constant byte address 0x4 - core index']
  #allocation1 [shape = 'u32[144,128]{1,0:T(1,128)}', space=vmem, size = 0x12000, scoped, tag = 'internal scratch']
  %s0 = inlined_call_operand.vmem [shape: f32[128,128], index: 0, kind: input, shape index: {}]
  %s1 = inlined_call_operand.vmem [shape: f32[128,128], index: 1, kind: output, shape index: {0}]
  %s2 = inlined_call_operand.vmem [shape: bf16[128,128], index: 2, kind: output, shape index: {1}]
  %3 = xla_tuple %s1, %s2
  %s4 = sld [smem:[#allocation0]]
  $region22: #{gcn_module_forward.4} parent=0
    _
  %s6 = ssub.s32 1, %s4
  %s7 = scalar_select 0, %s6, %s4
  // Predicated region
  $region2: #{gcn_module_forward.4} parent=0 // pred_check
    _
  $region3: #{gcn_module_forward.4} parent=0 // pred_check_branch
    %9 = sbr.rel (0) target = $region5
  $region4: #{gcn_module_forward.4} parent=0 // pred_region
    _
  $region5: #{gcn_module_forward.4} parent=0 // pred_fallthru
    _
  %v10 = vld [vmem:[%s0] sm:$0xff]
  %v11 = vld [vmem:[%s0 + $0x8] sm:$0xff]
  %v12 = vld [vmem:[%s0 + $0x10] sm:$0xff]
  %v13 = vld [vmem:[%s0 + $0x18] sm:$0xff]
  %v14 = vld [vmem:[%s0 + $0x20] sm:$0xff]
  %v15 = vld [vmem:[%s0 + $0x28] sm:$0xff]
  %v16 = vld [vmem:[%s0 + $0x30] sm:$0xff]
  %v17 = vld [vmem:[%s0 + $0x38] sm:$0xff]
  %v18 = vld [vmem:[%s0 + $0x40] sm:$0xff]
  %v19 = vld [vmem:[%s0 + $0x48] sm:$0xff]
  %v20 = vld [vmem:[%s0 + $0x50] sm:$0xff]
  %v21 = vld [vmem:[%s0 + $0x58] sm:$0xff]
  %v22 = vld [vmem:[%s0 + $0x60] sm:$0xff]
  %v23 = vld [vmem:[%s0 + $0x68] sm:$0xff]
  %v24 = vld [vmem:[%s0 + $0x70] sm:$0xff]
  %v25 = vld [vmem:[%s0 + $0x78] sm:$0xff]
  %v26 = vmul.f32 %v10, %v10
  %v27 = vmul.f32 %v11, %v11
  %v28 = vmul.f32 %v12, %v12
  %v29 = vmul.f32 %v13, %v13
  %v30 = vmul.f32 %v14, %v14
  %v31 = vmul.f32 %v15, %v15
  %v32 = vmul.f32 %v16, %v16
  %v33 = vmul.f32 %v17, %v17
  %v34 = vmul.f32 %v18, %v18
  %v35 = vmul.f32 %v19, %v19
  %v36 = vmul.f32 %v20, %v20
  %v37 = vmul.f32 %v21, %v21
  %v38 = vmul.f32 %v22, %v22
  %v39 = vmul.f32 %v23, %v23
  %v40 = vmul.f32 %v24, %v24
  %v41 = vmul.f32 %v25, %v25
  %42 = vadd.xlane.f32.xlu0 %v26
  %v43 = vpop.xlane.xlu0 %42
  %44 = vadd.xlane.f32.xlu0 %v27
  %v45 = vpop.xlane.xlu0 %44
  %46 = vadd.xlane.f32.xlu0 %v28
  %v47 = vpop.xlane.xlu0 %46
  %48 = vadd.xlane.f32.xlu0 %v29
  %v49 = vpop.xlane.xlu0 %48
  %50 = vadd.xlane.f32.xlu0 %v30
  %v51 = vpop.xlane.xlu0 %50
  %52 = vadd.xlane.f32.xlu0 %v31
  %v53 = vpop.xlane.xlu0 %52
  %54 = vadd.xlane.f32.xlu0 %v32
  %v55 = vpop.xlane.xlu0 %54
  %56 = vadd.xlane.f32.xlu0 %v33
  %v57 = vpop.xlane.xlu0 %56
  %58 = vadd.xlane.f32.xlu0 %v34
  %v59 = vpop.xlane.xlu0 %58
  %60 = vadd.xlane.f32.xlu0 %v35
  %v61 = vpop.xlane.xlu0 %60
  %62 = vadd.xlane.f32.xlu0 %v36
  %v63 = vpop.xlane.xlu0 %62
  %64 = vadd.xlane.f32.xlu0 %v37
  %v65 = vpop.xlane.xlu0 %64
  %66 = vadd.xlane.f32.xlu0 %v38
  %v67 = vpop.xlane.xlu0 %66
  %68 = vadd.xlane.f32.xlu0 %v39
  %v69 = vpop.xlane.xlu0 %68
  %70 = vadd.xlane.f32.xlu0 %v40
  %v71 = vpop.xlane.xlu0 %70
  %72 = vadd.xlane.f32.xlu0 %v41
  %v73 = vpop.xlane.xlu0 %72
  %v74 = vmax.f32 %v43, 1e-24
  %v75 = vmax.f32 %v45, 1e-24
  %v76 = vmax.f32 %v47, 1e-24
  %v77 = vmax.f32 %v49, 1e-24
  %v78 = vmax.f32 %v51, 1e-24
  %v79 = vmax.f32 %v53, 1e-24
  %v80 = vmax.f32 %v55, 1e-24
  %v81 = vmax.f32 %v57, 1e-24
  %v82 = vmax.f32 %v59, 1e-24
  %v83 = vmax.f32 %v61, 1e-24
  %v84 = vmax.f32 %v63, 1e-24
  %v85 = vmax.f32 %v65, 1e-24
  %v86 = vmax.f32 %v67, 1e-24
  %v87 = vmax.f32 %v69, 1e-24
  %v88 = vmax.f32 %v71, 1e-24
  %v89 = vmax.f32 %v73, 1e-24
  %v90 = vrsqrt.pop %v74
  %v91 = vrsqrt.pop %v75
  %v92 = vrsqrt.pop %v76
  %v93 = vrsqrt.pop %v77
  %v94 = vrsqrt.pop %v78
  %v95 = vrsqrt.pop %v79
  %v96 = vrsqrt.pop %v80
  %v97 = vrsqrt.pop %v81
  %v98 = vrsqrt.pop %v82
  %v99 = vrsqrt.pop %v83
  %v100 = vrsqrt.pop %v84
  %v101 = vrsqrt.pop %v85
  %v102 = vrsqrt.pop %v86
  %v103 = vrsqrt.pop %v87
  %v104 = vrsqrt.pop %v88
  %v105 = vrsqrt.pop %v89
  %v106 = vmul.f32 %v10, %v90
  %v107 = vmul.f32 %v11, %v91
  %v108 = vmul.f32 %v12, %v92
  %v109 = vmul.f32 %v13, %v93
  %v110 = vmul.f32 %v14, %v94
  %v111 = vmul.f32 %v15, %v95
  %v112 = vmul.f32 %v16, %v96
  %v113 = vmul.f32 %v17, %v97
  %v114 = vmul.f32 %v18, %v98
  %v115 = vmul.f32 %v19, %v99
  %v116 = vmul.f32 %v20, %v100
  %v117 = vmul.f32 %v21, %v101
  %v118 = vmul.f32 %v22, %v102
  %v119 = vmul.f32 %v23, %v103
  %v120 = vmul.f32 %v24, %v104
  %v121 = vmul.f32 %v25, %v105
  %122 = vst [vmem:[%s1] sm:$0xff] %v106
  %123 = vst [vmem:[%s1 + $0x8] sm:$0xff] %v107
  %124 = vst [vmem:[%s1 + $0x10] sm:$0xff] %v108
  %125 = vst [vmem:[%s1 + $0x18] sm:$0xff] %v109
  %126 = vst [vmem:[%s1 + $0x20] sm:$0xff] %v110
  %127 = vst [vmem:[%s1 + $0x28] sm:$0xff] %v111
  %128 = vst [vmem:[%s1 + $0x30] sm:$0xff] %v112
  %129 = vst [vmem:[%s1 + $0x38] sm:$0xff] %v113
  %130 = vst [vmem:[%s1 + $0x40] sm:$0xff] %v114
  %131 = vst [vmem:[%s1 + $0x48] sm:$0xff] %v115
  %132 = vst [vmem:[%s1 + $0x50] sm:$0xff] %v116
  %133 = vst [vmem:[%s1 + $0x58] sm:$0xff] %v117
  %134 = vst [vmem:[%s1 + $0x60] sm:$0xff] %v118
  %135 = vst [vmem:[%s1 + $0x68] sm:$0xff] %v119
  %136 = vst [vmem:[%s1 + $0x70] sm:$0xff] %v120
  %137 = vst [vmem:[%s1 + $0x78] sm:$0xff] %v121
  %v138 = vpack.c.bf16 %v107, %v106
  %v139 = vpack.c.bf16 %v109, %v108
  %v140 = vpack.c.bf16 %v111, %v110
  %v141 = vpack.c.bf16 %v113, %v112
  %v142 = vpack.c.bf16 %v115, %v114
  %v143 = vpack.c.bf16 %v117, %v116
  %v144 = vpack.c.bf16 %v119, %v118
  %v145 = vpack.c.bf16 %v121, %v120
  %v154 = vunpack.c.l.b16 %v138
  %v155 = vunpack.c.h.b16 %v138
  %v156 = vunpack.c.l.b16 %v139
  %v157 = vunpack.c.h.b16 %v139
  %v158 = vunpack.c.l.b16 %v140
  %v159 = vunpack.c.h.b16 %v140
  %v160 = vunpack.c.l.b16 %v141
  %v161 = vunpack.c.h.b16 %v141
  %v162 = vunpack.c.l.b16 %v142
  %v163 = vunpack.c.h.b16 %v142
  %v164 = vunpack.c.l.b16 %v143
  %v165 = vunpack.c.h.b16 %v143
  %v166 = vunpack.c.l.b16 %v144
  %v167 = vunpack.c.h.b16 %v144
  %v168 = vunpack.c.l.b16 %v145
  %v169 = vunpack.c.h.b16 %v145
  %v170 = vpack.c.b16 %v154, %v154
  %v171 = vpack.c.b16 %v155, %v155
  %v172 = vpack.c.b16 %v156, %v156
  %v173 = vpack.c.b16 %v157, %v157
  %v174 = vpack.c.b16 %v158, %v158
  %v175 = vpack.c.b16 %v159, %v159
  %v176 = vpack.c.b16 %v160, %v160
  %v177 = vpack.c.b16 %v161, %v161
  %v178 = vpack.c.b16 %v162, %v162
  %v179 = vpack.c.b16 %v163, %v163
  %v180 = vpack.c.b16 %v164, %v164
  %v181 = vpack.c.b16 %v165, %v165
  %v182 = vpack.c.b16 %v166, %v166
  %v183 = vpack.c.b16 %v167, %v167
  %v184 = vpack.c.b16 %v168, %v168
  %v185 = vpack.c.b16 %v169, %v169
  %202 = vst [vmem:[%s2] sm:$0xf] %v170
  %203 = vst [vmem:[%s2 + $0x4] sm:$0xf] %v171
  %204 = vst [vmem:[%s2 + $0x8] sm:$0xf] %v172
  %205 = vst [vmem:[%s2 + $0xc] sm:$0xf] %v173
  %206 = vst [vmem:[%s2 + $0x10] sm:$0xf] %v174
  %207 = vst [vmem:[%s2 + $0x14] sm:$0xf] %v175
  %208 = vst [vmem:[%s2 + $0x18] sm:$0xf] %v176
  %209 = vst [vmem:[%s2 + $0x1c] sm:$0xf] %v177
  %210 = vst [vmem:[%s2 + $0x20] sm:$0xf] %v178
  %211 = vst [vmem:[%s2 + $0x24] sm:$0xf] %v179
  %212 = vst [vmem:[%s2 + $0x28] sm:$0xf] %v180
  %213 = vst [vmem:[%s2 + $0x2c] sm:$0xf] %v181
  %214 = vst [vmem:[%s2 + $0x30] sm:$0xf] %v182
  %215 = vst [vmem:[%s2 + $0x34] sm:$0xf] %v183
  %216 = vst [vmem:[%s2 + $0x38] sm:$0xf] %v184
  %217 = vst [vmem:[%s2 + $0x3c] sm:$0xf] %v185
  // Predicated region
  $region6: #{gcn_module_forward.4} parent=0 // pred_check
    _
  $region7: #{gcn_module_forward.4} parent=0 // pred_check_branch
    %219 = sbr.rel (0) target = $region9
  $region8: #{gcn_module_forward.4} parent=0 // pred_region
    _
  $region9: #{gcn_module_forward.4} parent=0 // pred_fallthru
    _
  // Predicated region
  $region10: #{gcn_module_forward.4} parent=0 // pred_check
    _
  $region11: #{gcn_module_forward.4} parent=0 // pred_check_branch
    %221 = sbr.rel (0) target = $region13
  $region12: #{gcn_module_forward.4} parent=0 // pred_region
    _
  $region13: #{gcn_module_forward.4} parent=0 // pred_fallthru
    _
  // Predicated region
  $region14: #{gcn_module_forward.4} parent=0 // pred_check
    _
  $region15: #{gcn_module_forward.4} parent=0 // pred_check_branch
    %223 = sbr.rel (0) target = $region17
  $region16: #{gcn_module_forward.4} parent=0 // pred_region
    _
  $region17: #{gcn_module_forward.4} parent=0 // pred_fallthru
    _
  // Predicated region
  $region18: #{gcn_module_forward.4} parent=0 // pred_check
    _
  $region19: #{gcn_module_forward.4} parent=0 // pred_check_branch
    %225 = sbr.rel (0) target = $region21
  $region20: #{gcn_module_forward.4} parent=0 // pred_region
    _
  $region21: #{gcn_module_forward.4} parent=0 // pred_fallthru
    _

// kernel: gcn_module_forward.5
$region0: #{gcn_module_forward.5}
  #allocation0 [shape = 'u32[]', space=smem, size = 0x4, offset = 0x4, fixed_abs, tag = 'smem constant byte address 0x4 - core index']
  #allocation1 [shape = 'u32[144,128]{1,0:T(1,128)}', space=vmem, size = 0x12000, scoped, tag = 'internal scratch']
  %s0 = inlined_call_operand.vmem [shape: f32[128,64], index: 0, kind: input, shape index: {}]
  %s1 = inlined_call_operand.vmem [shape: f32[64,128], index: 1, kind: input, shape index: {}]
  %s2 = inlined_call_operand.vmem [shape: f32[1,128], index: 2, kind: input, shape index: {}]
  %s3 = inlined_call_operand.vmem [shape: f32[128,128], index: 3, kind: input, shape index: {}]
  %s4 = inlined_call_operand.vmem [shape: f32[1,128], index: 4, kind: input, shape index: {}]
  %s5 = inlined_call_operand.vmem [shape: f32[128,128], index: 5, kind: output, shape index: {0}]
  %s6 = inlined_call_operand.vmem [shape: bf16[128,128], index: 6, kind: output, shape index: {1}]
  %7 = xla_tuple %s5, %s6
  %s8 = sld [smem:[#allocation0]]
  $region38: #{gcn_module_forward.5} parent=0
    _
  %s10 = ssub.s32 1, %s8
  %s11 = scalar_select 0, %s10, %s8
  // Predicated region
  $region2: #{gcn_module_forward.5} parent=0 // pred_check
    _
  $region3: #{gcn_module_forward.5} parent=0 // pred_check_branch
    %13 = sbr.rel (0) target = $region5
  $region4: #{gcn_module_forward.5} parent=0 // pred_region
    _
  $region5: #{gcn_module_forward.5} parent=0 // pred_fallthru
    _
  // Predicated region
  $region6: #{gcn_module_forward.5} parent=0 // pred_check
    _
  $region7: #{gcn_module_forward.5} parent=0 // pred_check_branch
    %15 = sbr.rel (0) target = $region9
  $region8: #{gcn_module_forward.5} parent=0 // pred_region
    _
  $region9: #{gcn_module_forward.5} parent=0 // pred_fallthru
    _
  // Predicated region
  $region10: #{gcn_module_forward.5} parent=0 // pred_check
    _
  $region11: #{gcn_module_forward.5} parent=0 // pred_check_branch
    %17 = sbr.rel (0) target = $region13
  $region12: #{gcn_module_forward.5} parent=0 // pred_region
    _
  $region13: #{gcn_module_forward.5} parent=0 // pred_fallthru
    _
  // Predicated region
  $region14: #{gcn_module_forward.5} parent=0 // pred_check
    _
  $region15: #{gcn_module_forward.5} parent=0 // pred_check_branch
    %19 = sbr.rel (0) target = $region17
  $region16: #{gcn_module_forward.5} parent=0 // pred_region
    _
  $region17: #{gcn_module_forward.5} parent=0 // pred_fallthru
    _
  // Predicated region
  $region18: #{gcn_module_forward.5} parent=0 // pred_check
    _
  $region19: #{gcn_module_forward.5} parent=0 // pred_check_branch
    %21 = sbr.rel (0) target = $region21
  $region20: #{gcn_module_forward.5} parent=0 // pred_region
    _
  $region21: #{gcn_module_forward.5} parent=0 // pred_fallthru
    _
  %v23 = vld [vmem:[%s0] sm:$0xff]
  %v24 = vld [vmem:[%s0 + $0x8] sm:$0xff]
  %v25 = vld [vmem:[%s0 + $0x10] sm:$0xff]
  %v26 = vld [vmem:[%s0 + $0x18] sm:$0xff]
  %v27 = vld [vmem:[%s0 + $0x20] sm:$0xff]
  %v28 = vld [vmem:[%s0 + $0x28] sm:$0xff]
  %v29 = vld [vmem:[%s0 + $0x30] sm:$0xff]
  %v30 = vld [vmem:[%s0 + $0x38] sm:$0xff]
  %v31 = vld [vmem:[%s0 + $0x40] sm:$0xff]
  %v32 = vld [vmem:[%s0 + $0x48] sm:$0xff]
  %v33 = vld [vmem:[%s0 + $0x50] sm:$0xff]
  %v34 = vld [vmem:[%s0 + $0x58] sm:$0xff]
  %v35 = vld [vmem:[%s0 + $0x60] sm:$0xff]
  %v36 = vld [vmem:[%s0 + $0x68] sm:$0xff]
  %v37 = vld [vmem:[%s0 + $0x70] sm:$0xff]
  %v38 = vld [vmem:[%s0 + $0x78] sm:$0xff]
  %v39 = vpack.c.bf16 %v24, %v23
  %v40 = vpack.c.bf16 %v26, %v25
  %v41 = vpack.c.bf16 %v28, %v27
  %v42 = vpack.c.bf16 %v30, %v29
  %v43 = vpack.c.bf16 %v32, %v31
  %v44 = vpack.c.bf16 %v34, %v33
  %v45 = vpack.c.bf16 %v36, %v35
  %v46 = vpack.c.bf16 %v38, %v37
  %v47 = vld [vmem:[%s1] sm:$0xff]
  %v48 = vld [vmem:[%s1 + $0x8] sm:$0xff]
  %v49 = vld [vmem:[%s1 + $0x10] sm:$0xff]
  %v50 = vld [vmem:[%s1 + $0x18] sm:$0xff]
  %v51 = vld [vmem:[%s1 + $0x20] sm:$0xff]
  %v52 = vld [vmem:[%s1 + $0x28] sm:$0xff]
  %v53 = vld [vmem:[%s1 + $0x30] sm:$0xff]
  %v54 = vld [vmem:[%s1 + $0x38] sm:$0xff]
  %v55 = vpack.c.bf16 %v48, %v47
  %v56 = vpack.c.bf16 %v50, %v49
  %v57 = vpack.c.bf16 %v52, %v51
  %v58 = vpack.c.bf16 %v54, %v53
  %v59 = vld [vmem:[%s2] sm:$0x1]
  %v61 = vlaneseq
  %v62 = vshrl.u32 %v61, 7
  %v63 = vsub.s32 0, %v62
  %v64 = vrot.slane %v59, %v63
  %vm66 = vcmask 523264
  %v68 = vsel %vm66, %v39, 0
  %v71 = vsel %vm66, %v40, 0
  %v74 = vsel %vm66, %v41, 0
  %v77 = vsel %vm66, %v42, 0
  %v80 = vsel %vm66, %v43, 0
  %v83 = vsel %vm66, %v44, 0
  %v86 = vsel %vm66, %v45, 0
  %v89 = vsel %vm66, %v46, 0
  %91 = vmatprep.subr.bf16.mxu0 0
  %92 = vmatpush1.bf16.msra.mxu0 %v55
  %93 = vmatprep.subr.bf16.mxu0 0
  %94 = vmatpush1.bf16.msra.mxu0 %v56
  %95 = vmatprep.subr.bf16.mxu0 0
  %96 = vmatpush1.bf16.msra.mxu0 %v57
  %97 = vmatprep.subr.bf16.mxu0 0
  %98 = vmatpush1.bf16.msra.mxu0 %v58
  %99 = vmatprep.subr.bf16.mxu0 0
  %100 = vmatpush1.bf16.msra.mxu0 0
  %101 = vmatprep.subr.bf16.mxu0 0
  %102 = vmatpush1.bf16.msra.mxu0 0
  %103 = vmatprep.subr.bf16.mxu0 0
  %104 = vmatpush1.bf16.msra.mxu0 0
  %105 = vmatprep.subr.bf16.mxu0 0
  %106 = vmatpush1.bf16.msra.mxu0 0
  %107 = vmatprep.subr.bf16.mxu0 0
  %108 = vmatpush1.bf16.msra.mxu0 0
  %109 = vmatprep.subr.bf16.mxu0 0
  %110 = vmatpush1.bf16.msra.mxu0 0
  %111 = vmatprep.subr.bf16.mxu0 0
  %112 = vmatpush1.bf16.msra.mxu0 0
  %113 = vmatprep.subr.bf16.mxu0 0
  %114 = vmatpush1.bf16.msra.mxu0 0
  %115 = vmatprep.subr.bf16.mxu0 0
  %116 = vmatpush1.bf16.msra.mxu0 0
  %117 = vmatprep.subr.bf16.mxu0 0
  %118 = vmatpush1.bf16.msra.mxu0 0
  %119 = vmatprep.subr.bf16.mxu0 0
  %120 = vmatpush1.bf16.msra.mxu0 0
  %121 = vmatprep.subr.bf16.mxu0 0
  %122 = vmatpush1.bf16.msra.mxu0 0
  %123 = vmatprep.mubr.bf16.mxu0 0
  %124 = vmatmul.mubr.bf16.gmra.mrb[0].mxu0 %v68
  %v125 = vpop.f32.mrb[0].mxu0
  %v126 = vadd.f32 %v64, %v125
  %v127 = vpop.f32.mrb[0].mxu0
  %v128 = vpop.f32.mrb[0].mxu0
  %v129 = vadd.f32 %v64, %v128
  %v130 = vpop.f32.mrb[0].mxu0
  %131 = vmatprep.mubr.bf16.mxu0 0
  %132 = vmatmul.mubr.bf16.gmra.mrb[0].mxu0 %v71
  %v133 = vpop.f32.mrb[0].mxu0
  %v134 = vadd.f32 %v64, %v133
  %v135 = vpop.f32.mrb[0].mxu0
  %v136 = vpop.f32.mrb[0].mxu0
  %v137 = vadd.f32 %v64, %v136
  %v138 = vpop.f32.mrb[0].mxu0
  %139 = vmatprep.mubr.bf16.mxu0 0
  %140 = vmatmul.mubr.bf16.gmra.mrb[0].mxu0 %v74
  %v141 = vpop.f32.mrb[0].mxu0
  %v142 = vadd.f32 %v64, %v141
  %v143 = vpop.f32.mrb[0].mxu0
  %v144 = vpop.f32.mrb[0].mxu0
  %v145 = vadd.f32 %v64, %v144
  %v146 = vpop.f32.mrb[0].mxu0
  %147 = vmatprep.mubr.bf16.mxu0 0
  %148 = vmatmul.mubr.bf16.gmra.mrb[0].mxu0 %v77
  %v149 = vpop.f32.mrb[0].mxu0
  %v150 = vadd.f32 %v64, %v149
  %v151 = vpop.f32.mrb[0].mxu0
  %v152 = vpop.f32.mrb[0].mxu0
  %v153 = vadd.f32 %v64, %v152
  %v154 = vpop.f32.mrb[0].mxu0
  %155 = vmatprep.mubr.bf16.mxu0 0
  %156 = vmatmul.mubr.bf16.gmra.mrb[0].mxu0 %v80
  %v157 = vpop.f32.mrb[0].mxu0
  %v158 = vadd.f32 %v64, %v157
  %v159 = vpop.f32.mrb[0].mxu0
  %v160 = vpop.f32.mrb[0].mxu0
  %v161 = vadd.f32 %v64, %v160
  %v162 = vpop.f32.mrb[0].mxu0
  %163 = vmatprep.mubr.bf16.mxu0 0
  %164 = vmatmul.mubr.bf16.gmra.mrb[0].mxu0 %v83
  %v165 = vpop.f32.mrb[0].mxu0
  %v166 = vadd.f32 %v64, %v165
  %v167 = vpop.f32.mrb[0].mxu0
  %v168 = vpop.f32.mrb[0].mxu0
  %v169 = vadd.f32 %v64, %v168
  %v170 = vpop.f32.mrb[0].mxu0
  %171 = vmatprep.mubr.bf16.mxu0 0
  %172 = vmatmul.mubr.bf16.gmra.mrb[0].mxu0 %v86
  %v173 = vpop.f32.mrb[0].mxu0
  %v174 = vadd.f32 %v64, %v173
  %v175 = vpop.f32.mrb[0].mxu0
  %v176 = vpop.f32.mrb[0].mxu0
  %v177 = vadd.f32 %v64, %v176
  %v178 = vpop.f32.mrb[0].mxu0
  %179 = vmatprep.mubr.bf16.mxu0 0
  %180 = vmatmul.mubr.bf16.gmra.mrb[0].mxu0 %v89
  %v181 = vpop.f32.mrb[0].mxu0
  %v182 = vadd.f32 %v64, %v181
  %v183 = vpop.f32.mrb[0].mxu0
  %v184 = vpop.f32.mrb[0].mxu0
  %v185 = vadd.f32 %v64, %v184
  %v186 = vpop.f32.mrb[0].mxu0
  %187 = vdwg.mxu0
  %vm188 = vcmp.gt.f32.partialorder %v126, 0.0
  %vm189 = vcmp.gt.f32.partialorder %v129, 0.0
  %vm190 = vcmp.gt.f32.partialorder %v134, 0.0
  %vm191 = vcmp.gt.f32.partialorder %v137, 0.0
  %vm192 = vcmp.gt.f32.partialorder %v142, 0.0
  %vm193 = vcmp.gt.f32.partialorder %v145, 0.0
  %vm194 = vcmp.gt.f32.partialorder %v150, 0.0
  %vm195 = vcmp.gt.f32.partialorder %v153, 0.0
  %vm196 = vcmp.gt.f32.partialorder %v158, 0.0
  %vm197 = vcmp.gt.f32.partialorder %v161, 0.0
  %vm198 = vcmp.gt.f32.partialorder %v166, 0.0
  %vm199 = vcmp.gt.f32.partialorder %v169, 0.0
  %vm200 = vcmp.gt.f32.partialorder %v174, 0.0
  %vm201 = vcmp.gt.f32.partialorder %v177, 0.0
  %vm202 = vcmp.gt.f32.partialorder %v182, 0.0
  %vm203 = vcmp.gt.f32.partialorder %v185, 0.0
  %v204 = vmul.f32 %v126, 0.01
  %v205 = vmul.f32 %v129, 0.01
  %v206 = vmul.f32 %v134, 0.01
  %v207 = vmul.f32 %v137, 0.01
  %v208 = vmul.f32 %v142, 0.01
  %v209 = vmul.f32 %v145, 0.01
  %v210 = vmul.f32 %v150, 0.01
  %v211 = vmul.f32 %v153, 0.01
  %v212 = vmul.f32 %v158, 0.01
  %v213 = vmul.f32 %v161, 0.01
  %v214 = vmul.f32 %v166, 0.01
  %v215 = vmul.f32 %v169, 0.01
  %v216 = vmul.f32 %v174, 0.01
  %v217 = vmul.f32 %v177, 0.01
  %v218 = vmul.f32 %v182, 0.01
  %v219 = vmul.f32 %v185, 0.01
  %v220 = vsel %vm188, %v126, %v204
  %v221 = vsel %vm189, %v129, %v205
  %v222 = vsel %vm190, %v134, %v206
  %v223 = vsel %vm191, %v137, %v207
  %v224 = vsel %vm192, %v142, %v208
  %v225 = vsel %vm193, %v145, %v209
  %v226 = vsel %vm194, %v150, %v210
  %v227 = vsel %vm195, %v153, %v211
  %v228 = vsel %vm196, %v158, %v212
  %v229 = vsel %vm197, %v161, %v213
  %v230 = vsel %vm198, %v166, %v214
  %v231 = vsel %vm199, %v169, %v215
  %v232 = vsel %vm200, %v174, %v216
  %v233 = vsel %vm201, %v177, %v217
  %v234 = vsel %vm202, %v182, %v218
  %v235 = vsel %vm203, %v185, %v219
  %v236 = vpack.c.bf16 %v221, %v220
  %v237 = vpack.c.bf16 %v223, %v222
  %v238 = vpack.c.bf16 %v225, %v224
  %v239 = vpack.c.bf16 %v227, %v226
  %v240 = vpack.c.bf16 %v229, %v228
  %v241 = vpack.c.bf16 %v231, %v230
  %v242 = vpack.c.bf16 %v233, %v232
  %v243 = vpack.c.bf16 %v235, %v234
  %v244 = vld [vmem:[%s3] sm:$0xff]
  %v245 = vld [vmem:[%s3 + $0x8] sm:$0xff]
  %v246 = vld [vmem:[%s3 + $0x10] sm:$0xff]
  %v247 = vld [vmem:[%s3 + $0x18] sm:$0xff]
  %v248 = vld [vmem:[%s3 + $0x20] sm:$0xff]
  %v249 = vld [vmem:[%s3 + $0x28] sm:$0xff]
  %v250 = vld [vmem:[%s3 + $0x30] sm:$0xff]
  %v251 = vld [vmem:[%s3 + $0x38] sm:$0xff]
  %v252 = vld [vmem:[%s3 + $0x40] sm:$0xff]
  %v253 = vld [vmem:[%s3 + $0x48] sm:$0xff]
  %v254 = vld [vmem:[%s3 + $0x50] sm:$0xff]
  %v255 = vld [vmem:[%s3 + $0x58] sm:$0xff]
  %v256 = vld [vmem:[%s3 + $0x60] sm:$0xff]
  %v257 = vld [vmem:[%s3 + $0x68] sm:$0xff]
  %v258 = vld [vmem:[%s3 + $0x70] sm:$0xff]
  %v259 = vld [vmem:[%s3 + $0x78] sm:$0xff]
  %v260 = vpack.c.bf16 %v245, %v244
  %v261 = vpack.c.bf16 %v247, %v246
  %v262 = vpack.c.bf16 %v249, %v248
  %v263 = vpack.c.bf16 %v251, %v250
  %v264 = vpack.c.bf16 %v253, %v252
  %v265 = vpack.c.bf16 %v255, %v254
  %v266 = vpack.c.bf16 %v257, %v256
  %v267 = vpack.c.bf16 %v259, %v258
  %v268 = vld [vmem:[%s4] sm:$0x1]
  %v270 = vlaneseq
  %v271 = vshrl.u32 %v270, 7
  %v272 = vsub.s32 0, %v271
  %v273 = vrot.slane %v268, %v272
  %275 = vmatprep.subr.bf16.mxu0 0
  %276 = vmatpush1.bf16.msra.mxu0 %v260
  %277 = vmatprep.subr.bf16.mxu0 0
  %278 = vmatpush1.bf16.msra.mxu0 %v261
  %279 = vmatprep.subr.bf16.mxu0 0
  %280 = vmatpush1.bf16.msra.mxu0 %v262
  %281 = vmatprep.subr.bf16.mxu0 0
  %282 = vmatpush1.bf16.msra.mxu0 %v263
  %283 = vmatprep.subr.bf16.mxu0 0
  %284 = vmatpush1.bf16.msra.mxu0 %v264
  %285 = vmatprep.subr.bf16.mxu0 0
  %286 = vmatpush1.bf16.msra.mxu0 %v265
  %287 = vmatprep.subr.bf16.mxu0 0
  %288 = vmatpush1.bf16.msra.mxu0 %v266
  %289 = vmatprep.subr.bf16.mxu0 0
  %290 = vmatpush1.bf16.msra.mxu0 %v267
  %291 = vmatprep.subr.bf16.mxu0 0
  %292 = vmatpush1.bf16.msra.mxu0 0
  %293 = vmatprep.subr.bf16.mxu0 0
  %294 = vmatpush1.bf16.msra.mxu0 0
  %295 = vmatprep.subr.bf16.mxu0 0
  %296 = vmatpush1.bf16.msra.mxu0 0
  %297 = vmatprep.subr.bf16.mxu0 0
  %298 = vmatpush1.bf16.msra.mxu0 0
  %299 = vmatprep.subr.bf16.mxu0 0
  %300 = vmatpush1.bf16.msra.mxu0 0
  %301 = vmatprep.subr.bf16.mxu0 0
  %302 = vmatpush1.bf16.msra.mxu0 0
  %303 = vmatprep.subr.bf16.mxu0 0
  %304 = vmatpush1.bf16.msra.mxu0 0
  %305 = vmatprep.subr.bf16.mxu0 0
  %306 = vmatpush1.bf16.msra.mxu0 0
  %307 = vmatprep.mubr.bf16.mxu0 0
  %308 = vmatmul.mubr.bf16.gmra.mrb[0].mxu0 %v236
  %v309 = vpop.f32.mrb[0].mxu0
  %v310 = vadd.f32 %v273, %v309
  %v311 = vpop.f32.mrb[0].mxu0
  %v312 = vpop.f32.mrb[0].mxu0
  %v313 = vadd.f32 %v273, %v312
  %v314 = vpop.f32.mrb[0].mxu0
  %315 = vmatprep.mubr.bf16.mxu0 0
  %316 = vmatmul.mubr.bf16.gmra.mrb[0].mxu0 %v237
  %v317 = vpop.f32.mrb[0].mxu0
  %v318 = vadd.f32 %v273, %v317
  %v319 = vpop.f32.mrb[0].mxu0
  %v320 = vpop.f32.mrb[0].mxu0
  %v321 = vadd.f32 %v273, %v320
  %v322 = vpop.f32.mrb[0].mxu0
  %323 = vmatprep.mubr.bf16.mxu0 0
  %324 = vmatmul.mubr.bf16.gmra.mrb[0].mxu0 %v238
  %v325 = vpop.f32.mrb[0].mxu0
  %v326 = vadd.f32 %v273, %v325
  %v327 = vpop.f32.mrb[0].mxu0
  %v328 = vpop.f32.mrb[0].mxu0
  %v329 = vadd.f32 %v273, %v328
  %v330 = vpop.f32.mrb[0].mxu0
  %331 = vmatprep.mubr.bf16.mxu0 0
  %332 = vmatmul.mubr.bf16.gmra.mrb[0].mxu0 %v239
  %v333 = vpop.f32.mrb[0].mxu0
  %v334 = vadd.f32 %v273, %v333
  %v335 = vpop.f32.mrb[0].mxu0
  %v336 = vpop.f32.mrb[0].mxu0
  %v337 = vadd.f32 %v273, %v336
  %v338 = vpop.f32.mrb[0].mxu0
  %339 = vmatprep.mubr.bf16.mxu0 0
  %340 = vmatmul.mubr.bf16.gmra.mrb[0].mxu0 %v240
  %v341 = vpop.f32.mrb[0].mxu0
  %v342 = vadd.f32 %v273, %v341
  %v343 = vpop.f32.mrb[0].mxu0
  %v344 = vpop.f32.mrb[0].mxu0
  %v345 = vadd.f32 %v273, %v344
  %v346 = vpop.f32.mrb[0].mxu0
  %347 = vmatprep.mubr.bf16.mxu0 0
  %348 = vmatmul.mubr.bf16.gmra.mrb[0].mxu0 %v241
  %v349 = vpop.f32.mrb[0].mxu0
  %v350 = vadd.f32 %v273, %v349
  %v351 = vpop.f32.mrb[0].mxu0
  %v352 = vpop.f32.mrb[0].mxu0
  %v353 = vadd.f32 %v273, %v352
  %v354 = vpop.f32.mrb[0].mxu0
  %355 = vmatprep.mubr.bf16.mxu0 0
  %356 = vmatmul.mubr.bf16.gmra.mrb[0].mxu0 %v242
  %v357 = vpop.f32.mrb[0].mxu0
  %v358 = vadd.f32 %v273, %v357
  %v359 = vpop.f32.mrb[0].mxu0
  %v360 = vpop.f32.mrb[0].mxu0
  %v361 = vadd.f32 %v273, %v360
  %v362 = vpop.f32.mrb[0].mxu0
  %363 = vmatprep.mubr.bf16.mxu0 0
  %364 = vmatmul.mubr.bf16.gmra.mrb[0].mxu0 %v243
  %v365 = vpop.f32.mrb[0].mxu0
  %v366 = vadd.f32 %v273, %v365
  %v367 = vpop.f32.mrb[0].mxu0
  %v368 = vpop.f32.mrb[0].mxu0
  %v369 = vadd.f32 %v273, %v368
  %v370 = vpop.f32.mrb[0].mxu0
  %371 = vdwg.mxu0
  %v372 = vmul.f32 %v310, %v310
  %v373 = vmul.f32 %v313, %v313
  %v374 = vmul.f32 %v318, %v318
  %v375 = vmul.f32 %v321, %v321
  %v376 = vmul.f32 %v326, %v326
  %v377 = vmul.f32 %v329, %v329
  %v378 = vmul.f32 %v334, %v334
  %v379 = vmul.f32 %v337, %v337
  %v380 = vmul.f32 %v342, %v342
  %v381 = vmul.f32 %v345, %v345
  %v382 = vmul.f32 %v350, %v350
  %v383 = vmul.f32 %v353, %v353
  %v384 = vmul.f32 %v358, %v358
  %v385 = vmul.f32 %v361, %v361
  %v386 = vmul.f32 %v366, %v366
  %v387 = vmul.f32 %v369, %v369
  %388 = vadd.xlane.f32.xlu0 %v372
  %v389 = vpop.xlane.xlu0 %388
  %390 = vadd.xlane.f32.xlu0 %v373
  %v391 = vpop.xlane.xlu0 %390
  %392 = vadd.xlane.f32.xlu0 %v374
  %v393 = vpop.xlane.xlu0 %392
  %394 = vadd.xlane.f32.xlu0 %v375
  %v395 = vpop.xlane.xlu0 %394
  %396 = vadd.xlane.f32.xlu0 %v376
  %v397 = vpop.xlane.xlu0 %396
  %398 = vadd.xlane.f32.xlu0 %v377
  %v399 = vpop.xlane.xlu0 %398
  %400 = vadd.xlane.f32.xlu0 %v378
  %v401 = vpop.xlane.xlu0 %400
  %402 = vadd.xlane.f32.xlu0 %v379
  %v403 = vpop.xlane.xlu0 %402
  %404 = vadd.xlane.f32.xlu0 %v380
  %v405 = vpop.xlane.xlu0 %404
  %406 = vadd.xlane.f32.xlu0 %v381
  %v407 = vpop.xlane.xlu0 %406
  %408 = vadd.xlane.f32.xlu0 %v382
  %v409 = vpop.xlane.xlu0 %408
  %410 = vadd.xlane.f32.xlu0 %v383
  %v411 = vpop.xlane.xlu0 %410
  %412 = vadd.xlane.f32.xlu0 %v384
  %v413 = vpop.xlane.xlu0 %412
  %414 = vadd.xlane.f32.xlu0 %v385
  %v415 = vpop.xlane.xlu0 %414
  %416 = vadd.xlane.f32.xlu0 %v386
  %v417 = vpop.xlane.xlu0 %416
  %418 = vadd.xlane.f32.xlu0 %v387
  %v419 = vpop.xlane.xlu0 %418
  %v420 = vmax.f32 %v389, 1e-24
  %v421 = vmax.f32 %v391, 1e-24
  %v422 = vmax.f32 %v393, 1e-24
  %v423 = vmax.f32 %v395, 1e-24
  %v424 = vmax.f32 %v397, 1e-24
  %v425 = vmax.f32 %v399, 1e-24
  %v426 = vmax.f32 %v401, 1e-24
  %v427 = vmax.f32 %v403, 1e-24
  %v428 = vmax.f32 %v405, 1e-24
  %v429 = vmax.f32 %v407, 1e-24
  %v430 = vmax.f32 %v409, 1e-24
  %v431 = vmax.f32 %v411, 1e-24
  %v432 = vmax.f32 %v413, 1e-24
  %v433 = vmax.f32 %v415, 1e-24
  %v434 = vmax.f32 %v417, 1e-24
  %v435 = vmax.f32 %v419, 1e-24
  %v436 = vrsqrt.pop %v420
  %v437 = vrsqrt.pop %v421
  %v438 = vrsqrt.pop %v422
  %v439 = vrsqrt.pop %v423
  %v440 = vrsqrt.pop %v424
  %v441 = vrsqrt.pop %v425
  %v442 = vrsqrt.pop %v426
  %v443 = vrsqrt.pop %v427
  %v444 = vrsqrt.pop %v428
  %v445 = vrsqrt.pop %v429
  %v446 = vrsqrt.pop %v430
  %v447 = vrsqrt.pop %v431
  %v448 = vrsqrt.pop %v432
  %v449 = vrsqrt.pop %v433
  %v450 = vrsqrt.pop %v434
  %v451 = vrsqrt.pop %v435
  %v452 = vmul.f32 %v310, %v436
  %v453 = vmul.f32 %v313, %v437
  %v454 = vmul.f32 %v318, %v438
  %v455 = vmul.f32 %v321, %v439
  %v456 = vmul.f32 %v326, %v440
  %v457 = vmul.f32 %v329, %v441
  %v458 = vmul.f32 %v334, %v442
  %v459 = vmul.f32 %v337, %v443
  %v460 = vmul.f32 %v342, %v444
  %v461 = vmul.f32 %v345, %v445
  %v462 = vmul.f32 %v350, %v446
  %v463 = vmul.f32 %v353, %v447
  %v464 = vmul.f32 %v358, %v448
  %v465 = vmul.f32 %v361, %v449
  %v466 = vmul.f32 %v366, %v450
  %v467 = vmul.f32 %v369, %v451
  %468 = vst [vmem:[%s5] sm:$0xff] %v452
  %469 = vst [vmem:[%s5 + $0x8] sm:$0xff] %v453
  %470 = vst [vmem:[%s5 + $0x10] sm:$0xff] %v454
  %471 = vst [vmem:[%s5 + $0x18] sm:$0xff] %v455
  %472 = vst [vmem:[%s5 + $0x20] sm:$0xff] %v456
  %473 = vst [vmem:[%s5 + $0x28] sm:$0xff] %v457
  %474 = vst [vmem:[%s5 + $0x30] sm:$0xff] %v458
  %475 = vst [vmem:[%s5 + $0x38] sm:$0xff] %v459
  %476 = vst [vmem:[%s5 + $0x40] sm:$0xff] %v460
  %477 = vst [vmem:[%s5 + $0x48] sm:$0xff] %v461
  %478 = vst [vmem:[%s5 + $0x50] sm:$0xff] %v462
  %479 = vst [vmem:[%s5 + $0x58] sm:$0xff] %v463
  %480 = vst [vmem:[%s5 + $0x60] sm:$0xff] %v464
  %481 = vst [vmem:[%s5 + $0x68] sm:$0xff] %v465
  %482 = vst [vmem:[%s5 + $0x70] sm:$0xff] %v466
  %483 = vst [vmem:[%s5 + $0x78] sm:$0xff] %v467
  %v484 = vpack.c.bf16 %v453, %v452
  %v485 = vpack.c.bf16 %v455, %v454
  %v486 = vpack.c.bf16 %v457, %v456
  %v487 = vpack.c.bf16 %v459, %v458
  %v488 = vpack.c.bf16 %v461, %v460
  %v489 = vpack.c.bf16 %v463, %v462
  %v490 = vpack.c.bf16 %v465, %v464
  %v491 = vpack.c.bf16 %v467, %v466
  %v500 = vunpack.c.l.b16 %v484
  %v501 = vunpack.c.h.b16 %v484
  %v502 = vunpack.c.l.b16 %v485
  %v503 = vunpack.c.h.b16 %v485
  %v504 = vunpack.c.l.b16 %v486
  %v505 = vunpack.c.h.b16 %v486
  %v506 = vunpack.c.l.b16 %v487
  %v507 = vunpack.c.h.b16 %v487
  %v508 = vunpack.c.l.b16 %v488
  %v509 = vunpack.c.h.b16 %v488
  %v510 = vunpack.c.l.b16 %v489
  %v511 = vunpack.c.h.b16 %v489
  %v512 = vunpack.c.l.b16 %v490
  %v513 = vunpack.c.h.b16 %v490
  %v514 = vunpack.c.l.b16 %v491
  %v515 = vunpack.c.h.b16 %v491
  %v516 = vpack.c.b16 %v500, %v500
  %v517 = vpack.c.b16 %v501, %v501
  %v518 = vpack.c.b16 %v502, %v502
  %v519 = vpack.c.b16 %v503, %v503
  %v520 = vpack.c.b16 %v504, %v504
  %v521 = vpack.c.b16 %v505, %v505
  %v522 = vpack.c.b16 %v506, %v506
  %v523 = vpack.c.b16 %v507, %v507
  %v524 = vpack.c.b16 %v508, %v508
  %v525 = vpack.c.b16 %v509, %v509
  %v526 = vpack.c.b16 %v510, %v510
  %v527 = vpack.c.b16 %v511, %v511
  %v528 = vpack.c.b16 %v512, %v512
  %v529 = vpack.c.b16 %v513, %v513
  %v530 = vpack.c.b16 %v514, %v514
  %v531 = vpack.c.b16 %v515, %v515
  %548 = vst [vmem:[%s6] sm:$0xf] %v516
  %549 = vst [vmem:[%s6 + $0x4] sm:$0xf] %v517
  %550 = vst [vmem:[%s6 + $0x8] sm:$0xf] %v518
  %551 = vst [vmem:[%s6 + $0xc] sm:$0xf] %v519
  %552 = vst [vmem:[%s6 + $0x10] sm:$0xf] %v520
  %553 = vst [vmem:[%s6 + $0x14] sm:$0xf] %v521
  %554 = vst [vmem:[%s6 + $0x18] sm:$0xf] %v522
  %555 = vst [vmem:[%s6 + $0x1c] sm:$0xf] %v523
  %556 = vst [vmem:[%s6 + $0x20] sm:$0xf] %v524
  %557 = vst [vmem:[%s6 + $0x24] sm:$0xf] %v525
  %558 = vst [vmem:[%s6 + $0x28] sm:$0xf] %v526
  %559 = vst [vmem:[%s6 + $0x2c] sm:$0xf] %v527
  %560 = vst [vmem:[%s6 + $0x30] sm:$0xf] %v528
  %561 = vst [vmem:[%s6 + $0x34] sm:$0xf] %v529
  %562 = vst [vmem:[%s6 + $0x38] sm:$0xf] %v530
  %563 = vst [vmem:[%s6 + $0x3c] sm:$0xf] %v531
  // Predicated region
  $region22: #{gcn_module_forward.5} parent=0 // pred_check
    _
  $region23: #{gcn_module_forward.5} parent=0 // pred_check_branch
    %565 = sbr.rel (0) target = $region25
  $region24: #{gcn_module_forward.5} parent=0 // pred_region
    _
  $region25: #{gcn_module_forward.5} parent=0 // pred_fallthru
    _
  // Predicated region
  $region26: #{gcn_module_forward.5} parent=0 // pred_check
    _
  $region27: #{gcn_module_forward.5} parent=0 // pred_check_branch
    %567 = sbr.rel (0) target = $region29
  $region28: #{gcn_module_forward.5} parent=0 // pred_region
    _
  $region29: #{gcn_module_forward.5} parent=0 // pred_fallthru
    _
  // Predicated region
  $region30: #{gcn_module_forward.5} parent=0 // pred_check
    _
  $region31: #{gcn_module_forward.5} parent=0 // pred_check_branch
    %569 = sbr.rel (0) target = $region33
  $region32: #{gcn_module_forward.5} parent=0 // pred_region
    _
  $region33: #{gcn_module_forward.5} parent=0 // pred_fallthru
    _
  // Predicated region
  $region34: #{gcn_module_forward.5} parent=0 // pred_check
    _
  $region35: #{gcn_module_forward.5} parent=0 // pred_check_branch
    %571 = sbr.rel (0) target = $region37
  $region36: #{gcn_module_forward.5} parent=0 // pred_region
    _
  $region37: #{gcn_module_forward.5} parent=0 // pred_fallthru
    _

// kernel: gcn_module_forward.6
$region0: #{gcn_module_forward.6}
  #allocation0 [shape = 'u32[]', space=smem, size = 0x4, offset = 0x4, fixed_abs, tag = 'smem constant byte address 0x4 - core index']
  #allocation1 [shape = 'u32[144,128]{1,0:T(1,128)}', space=vmem, size = 0x12000, scoped, tag = 'internal scratch']
  %s0 = inlined_call_operand.vmem [shape: bf16[256,256], index: 0, kind: input, shape index: {}]
  %s1 = inlined_call_operand.vmem [shape: bf16[256,128], index: 1, kind: input, shape index: {}]
  %s2 = inlined_call_operand.vmem [shape: f32[256,128], index: 2, kind: output, shape index: {0}]
  %s3 = inlined_call_operand.vmem [shape: bf16[256,128], index: 3, kind: output, shape index: {1}]
  %4 = xla_tuple %s2, %s3
  %s5 = sld [smem:[#allocation0]]
  $region34: #{gcn_module_forward.6} parent=0
    _
  %s7 = ssub.s32 1, %s5
  %s8 = scalar_select 0, %s7, %s5
  // Predicated region
  $region2: #{gcn_module_forward.6} parent=0 // pred_check
    _
  $region3: #{gcn_module_forward.6} parent=0 // pred_check_branch
    %10 = sbr.rel (0) target = $region5
  $region4: #{gcn_module_forward.6} parent=0 // pred_region
    _
  $region5: #{gcn_module_forward.6} parent=0 // pred_fallthru
    _
  // Predicated region
  $region6: #{gcn_module_forward.6} parent=0 // pred_check
    _
  $region7: #{gcn_module_forward.6} parent=0 // pred_check_branch
    %12 = sbr.rel (0) target = $region9
  $region8: #{gcn_module_forward.6} parent=0 // pred_region
    _
  $region9: #{gcn_module_forward.6} parent=0 // pred_fallthru
    _
  %p14 = scmp.eq.s32.totalorder 0, 0
  // Predicated region
  $region10: #{gcn_module_forward.6} parent=0 // pred_check
    %p15 = pneg %p14
  $region11: #{gcn_module_forward.6} parent=0 // pred_check_branch
    %17 = sbr.rel (%p15) target = $region13
  $region12: #{gcn_module_forward.6} parent=0 // pred_region
    %18 = vst [vmem:[%s2] sm:$0xff] 0.0
    %19 = vst [vmem:[%s2 + $0x8] sm:$0xff] 0.0
    %20 = vst [vmem:[%s2 + $0x10] sm:$0xff] 0.0
    %21 = vst [vmem:[%s2 + $0x18] sm:$0xff] 0.0
    %22 = vst [vmem:[%s2 + $0x20] sm:$0xff] 0.0
    %23 = vst [vmem:[%s2 + $0x28] sm:$0xff] 0.0
    %24 = vst [vmem:[%s2 + $0x30] sm:$0xff] 0.0
    %25 = vst [vmem:[%s2 + $0x38] sm:$0xff] 0.0
    %26 = vst [vmem:[%s2 + $0x40] sm:$0xff] 0.0
    %27 = vst [vmem:[%s2 + $0x48] sm:$0xff] 0.0
    %28 = vst [vmem:[%s2 + $0x50] sm:$0xff] 0.0
    %29 = vst [vmem:[%s2 + $0x58] sm:$0xff] 0.0
    %30 = vst [vmem:[%s2 + $0x60] sm:$0xff] 0.0
    %31 = vst [vmem:[%s2 + $0x68] sm:$0xff] 0.0
    %32 = vst [vmem:[%s2 + $0x70] sm:$0xff] 0.0
    %33 = vst [vmem:[%s2 + $0x78] sm:$0xff] 0.0
    %34 = vst [vmem:[%s2 + $0x80] sm:$0xff] 0.0
    %35 = vst [vmem:[%s2 + $0x88] sm:$0xff] 0.0
    %36 = vst [vmem:[%s2 + $0x90] sm:$0xff] 0.0
    %37 = vst [vmem:[%s2 + $0x98] sm:$0xff] 0.0
    %38 = vst [vmem:[%s2 + $0xa0] sm:$0xff] 0.0
    %39 = vst [vmem:[%s2 + $0xa8] sm:$0xff] 0.0
    %40 = vst [vmem:[%s2 + $0xb0] sm:$0xff] 0.0
    %41 = vst [vmem:[%s2 + $0xb8] sm:$0xff] 0.0
    %42 = vst [vmem:[%s2 + $0xc0] sm:$0xff] 0.0
    %43 = vst [vmem:[%s2 + $0xc8] sm:$0xff] 0.0
    %44 = vst [vmem:[%s2 + $0xd0] sm:$0xff] 0.0
    %45 = vst [vmem:[%s2 + $0xd8] sm:$0xff] 0.0
    %46 = vst [vmem:[%s2 + $0xe0] sm:$0xff] 0.0
    %47 = vst [vmem:[%s2 + $0xe8] sm:$0xff] 0.0
    %48 = vst [vmem:[%s2 + $0xf0] sm:$0xff] 0.0
    %49 = vst [vmem:[%s2 + $0xf8] sm:$0xff] 0.0
  $region13: #{gcn_module_forward.6} parent=0 // pred_fallthru
    _
  %s50 = smul.u32 0, 256
  %s51 = sshra.s32 %s50, 3
  %s52 = sand.u32 %s50, 7
  %s53 = smul.addr %s51, 4
  %s54 = scalar_lea.vmem %s1, %s53
  %v55 = vld [vmem:[%s54] sm:$0xf]
  %v56 = vld [vmem:[%s54 + $0x4] sm:$0xf]
  %v57 = vld [vmem:[%s54 + $0x8] sm:$0xf]
  %v58 = vld [vmem:[%s54 + $0xc] sm:$0xf]
  %v59 = vld [vmem:[%s54 + $0x10] sm:$0xf]
  %v60 = vld [vmem:[%s54 + $0x14] sm:$0xf]
  %v61 = vld [vmem:[%s54 + $0x18] sm:$0xf]
  %v62 = vld [vmem:[%s54 + $0x1c] sm:$0xf]
  %v63 = vld [vmem:[%s54 + $0x20] sm:$0xf]
  %v64 = vld [vmem:[%s54 + $0x24] sm:$0xf]
  %v65 = vld [vmem:[%s54 + $0x28] sm:$0xf]
  %v66 = vld [vmem:[%s54 + $0x2c] sm:$0xf]
  %v67 = vld [vmem:[%s54 + $0x30] sm:$0xf]
  %v68 = vld [vmem:[%s54 + $0x34] sm:$0xf]
  %v69 = vld [vmem:[%s54 + $0x38] sm:$0xf]
  %v70 = vld [vmem:[%s54 + $0x3c] sm:$0xf]
  %v71 = vld [vmem:[%s54 + $0x40] sm:$0xf]
  %v72 = vld [vmem:[%s54 + $0x44] sm:$0xf]
  %v73 = vld [vmem:[%s54 + $0x48] sm:$0xf]
  %v74 = vld [vmem:[%s54 + $0x4c] sm:$0xf]
  %v75 = vld [vmem:[%s54 + $0x50] sm:$0xf]
  %v76 = vld [vmem:[%s54 + $0x54] sm:$0xf]
  %v77 = vld [vmem:[%s54 + $0x58] sm:$0xf]
  %v78 = vld [vmem:[%s54 + $0x5c] sm:$0xf]
  %v79 = vld [vmem:[%s54 + $0x60] sm:$0xf]
  %v80 = vld [vmem:[%s54 + $0x64] sm:$0xf]
  %v81 = vld [vmem:[%s54 + $0x68] sm:$0xf]
  %v82 = vld [vmem:[%s54 + $0x6c] sm:$0xf]
  %v83 = vld [vmem:[%s54 + $0x70] sm:$0xf]
  %v84 = vld [vmem:[%s54 + $0x74] sm:$0xf]
  %v85 = vld [vmem:[%s54 + $0x78] sm:$0xf]
  %v86 = vld [vmem:[%s54 + $0x7c] sm:$0xf]
  %v87 = vld [vmem:[%s2] sm:$0xff]
  %v88 = vld [vmem:[%s2 + $0x8] sm:$0xff]
  %v89 = vld [vmem:[%s2 + $0x10] sm:$0xff]
  %v90 = vld [vmem:[%s2 + $0x18] sm:$0xff]
  %v91 = vld [vmem:[%s2 + $0x20] sm:$0xff]
  %v92 = vld [vmem:[%s2 + $0x28] sm:$0xff]
  %v93 = vld [vmem:[%s2 + $0x30] sm:$0xff]
  %v94 = vld [vmem:[%s2 + $0x38] sm:$0xff]
  %v95 = vld [vmem:[%s2 + $0x40] sm:$0xff]
  %v96 = vld [vmem:[%s2 + $0x48] sm:$0xff]
  %v97 = vld [vmem:[%s2 + $0x50] sm:$0xff]
  %v98 = vld [vmem:[%s2 + $0x58] sm:$0xff]
  %v99 = vld [vmem:[%s2 + $0x60] sm:$0xff]
  %v100 = vld [vmem:[%s2 + $0x68] sm:$0xff]
  %v101 = vld [vmem:[%s2 + $0x70] sm:$0xff]
  %v102 = vld [vmem:[%s2 + $0x78] sm:$0xff]
  %v103 = vld [vmem:[%s2 + $0x80] sm:$0xff]
  %v104 = vld [vmem:[%s2 + $0x88] sm:$0xff]
  %v105 = vld [vmem:[%s2 + $0x90] sm:$0xff]
  %v106 = vld [vmem:[%s2 + $0x98] sm:$0xff]
  %v107 = vld [vmem:[%s2 + $0xa0] sm:$0xff]
  %v108 = vld [vmem:[%s2 + $0xa8] sm:$0xff]
  %v109 = vld [vmem:[%s2 + $0xb0] sm:$0xff]
  %v110 = vld [vmem:[%s2 + $0xb8] sm:$0xff]
  %v111 = vld [vmem:[%s2 + $0xc0] sm:$0xff]
  %v112 = vld [vmem:[%s2 + $0xc8] sm:$0xff]
  %v113 = vld [vmem:[%s2 + $0xd0] sm:$0xff]
  %v114 = vld [vmem:[%s2 + $0xd8] sm:$0xff]
  %v115 = vld [vmem:[%s2 + $0xe0] sm:$0xff]
  %v116 = vld [vmem:[%s2 + $0xe8] sm:$0xff]
  %v117 = vld [vmem:[%s2 + $0xf0] sm:$0xff]
  %v118 = vld [vmem:[%s2 + $0xf8] sm:$0xff]
  %v119 = vld [vmem:[%s0] sm:$0xff]
  %v120 = vld [vmem:[%s0 + $0x8] sm:$0xff]
  %v121 = vld [vmem:[%s0 + $0x10] sm:$0xff]
  %v122 = vld [vmem:[%s0 + $0x18] sm:$0xff]
  %v123 = vld [vmem:[%s0 + $0x20] sm:$0xff]
  %v124 = vld [vmem:[%s0 + $0x28] sm:$0xff]
  %v125 = vld [vmem:[%s0 + $0x30] sm:$0xff]
  %v126 = vld [vmem:[%s0 + $0x38] sm:$0xff]
  %v127 = vld [vmem:[%s0 + $0x40] sm:$0xff]
  %v128 = vld [vmem:[%s0 + $0x48] sm:$0xff]
  %v129 = vld [vmem:[%s0 + $0x50] sm:$0xff]
  %v130 = vld [vmem:[%s0 + $0x58] sm:$0xff]
  %v131 = vld [vmem:[%s0 + $0x60] sm:$0xff]
  %v132 = vld [vmem:[%s0 + $0x68] sm:$0xff]
  %v133 = vld [vmem:[%s0 + $0x70] sm:$0xff]
  %v134 = vld [vmem:[%s0 + $0x78] sm:$0xff]
  %v135 = vld [vmem:[%s0 + $0x80] sm:$0xff]
  %v136 = vld [vmem:[%s0 + $0x88] sm:$0xff]
  %v137 = vld [vmem:[%s0 + $0x90] sm:$0xff]
  %v138 = vld [vmem:[%s0 + $0x98] sm:$0xff]
  %v139 = vld [vmem:[%s0 + $0xa0] sm:$0xff]
  %v140 = vld [vmem:[%s0 + $0xa8] sm:$0xff]
  %v141 = vld [vmem:[%s0 + $0xb0] sm:$0xff]
  %v142 = vld [vmem:[%s0 + $0xb8] sm:$0xff]
  %v143 = vld [vmem:[%s0 + $0xc0] sm:$0xff]
  %v144 = vld [vmem:[%s0 + $0xc8] sm:$0xff]
  %v145 = vld [vmem:[%s0 + $0xd0] sm:$0xff]
  %v146 = vld [vmem:[%s0 + $0xd8] sm:$0xff]
  %v147 = vld [vmem:[%s0 + $0xe0] sm:$0xff]
  %v148 = vld [vmem:[%s0 + $0xe8] sm:$0xff]
  %v149 = vld [vmem:[%s0 + $0xf0] sm:$0xff]
  %v150 = vld [vmem:[%s0 + $0xf8] sm:$0xff]
  %v183 = vunpack.c.l.b16 %v119
  %v184 = vunpack.c.h.b16 %v119
  %v185 = vunpack.c.l.b16 %v120
  %v186 = vunpack.c.h.b16 %v120
  %v187 = vunpack.c.l.b16 %v121
  %v188 = vunpack.c.h.b16 %v121
  %v189 = vunpack.c.l.b16 %v122
  %v190 = vunpack.c.h.b16 %v122
  %v191 = vunpack.c.l.b16 %v123
  %v192 = vunpack.c.h.b16 %v123
  %v193 = vunpack.c.l.b16 %v124
  %v194 = vunpack.c.h.b16 %v124
  %v195 = vunpack.c.l.b16 %v125
  %v196 = vunpack.c.h.b16 %v125
  %v197 = vunpack.c.l.b16 %v126
  %v198 = vunpack.c.h.b16 %v126
  %v199 = vunpack.c.l.b16 %v127
  %v200 = vunpack.c.h.b16 %v127
  %v201 = vunpack.c.l.b16 %v128
  %v202 = vunpack.c.h.b16 %v128
  %v203 = vunpack.c.l.b16 %v129
  %v204 = vunpack.c.h.b16 %v129
  %v205 = vunpack.c.l.b16 %v130
  %v206 = vunpack.c.h.b16 %v130
  %v207 = vunpack.c.l.b16 %v131
  %v208 = vunpack.c.h.b16 %v131
  %v209 = vunpack.c.l.b16 %v132
  %v210 = vunpack.c.h.b16 %v132
  %v211 = vunpack.c.l.b16 %v133
  %v212 = vunpack.c.h.b16 %v133
  %v213 = vunpack.c.l.b16 %v134
  %v214 = vunpack.c.h.b16 %v134
  %v215 = vunpack.c.l.b16 %v135
  %v216 = vunpack.c.h.b16 %v135
  %v217 = vunpack.c.l.b16 %v136
  %v218 = vunpack.c.h.b16 %v136
  %v219 = vunpack.c.l.b16 %v137
  %v220 = vunpack.c.h.b16 %v137
  %v221 = vunpack.c.l.b16 %v138
  %v222 = vunpack.c.h.b16 %v138
  %v223 = vunpack.c.l.b16 %v139
  %v224 = vunpack.c.h.b16 %v139
  %v225 = vunpack.c.l.b16 %v140
  %v226 = vunpack.c.h.b16 %v140
  %v227 = vunpack.c.l.b16 %v141
  %v228 = vunpack.c.h.b16 %v141
  %v229 = vunpack.c.l.b16 %v142
  %v230 = vunpack.c.h.b16 %v142
  %v231 = vunpack.c.l.b16 %v143
  %v232 = vunpack.c.h.b16 %v143
  %v233 = vunpack.c.l.b16 %v144
  %v234 = vunpack.c.h.b16 %v144
  %v235 = vunpack.c.l.b16 %v145
  %v236 = vunpack.c.h.b16 %v145
  %v237 = vunpack.c.l.b16 %v146
  %v238 = vunpack.c.h.b16 %v146
  %v239 = vunpack.c.l.b16 %v147
  %v240 = vunpack.c.h.b16 %v147
  %v241 = vunpack.c.l.b16 %v148
  %v242 = vunpack.c.h.b16 %v148
  %v243 = vunpack.c.l.b16 %v149
  %v244 = vunpack.c.h.b16 %v149
  %v245 = vunpack.c.l.b16 %v150
  %v246 = vunpack.c.h.b16 %v150
  %v247 = vpack.c.b16 %v185, %v183
  %v248 = vpack.c.b16 %v186, %v184
  %v249 = vpack.c.b16 %v189, %v187
  %v250 = vpack.c.b16 %v190, %v188
  %v251 = vpack.c.b16 %v193, %v191
  %v252 = vpack.c.b16 %v194, %v192
  %v253 = vpack.c.b16 %v197, %v195
  %v254 = vpack.c.b16 %v198, %v196
  %v255 = vpack.c.b16 %v201, %v199
  %v256 = vpack.c.b16 %v202, %v200
  %v257 = vpack.c.b16 %v205, %v203
  %v258 = vpack.c.b16 %v206, %v204
  %v259 = vpack.c.b16 %v209, %v207
  %v260 = vpack.c.b16 %v210, %v208
  %v261 = vpack.c.b16 %v213, %v211
  %v262 = vpack.c.b16 %v214, %v212
  %v263 = vpack.c.b16 %v217, %v215
  %v264 = vpack.c.b16 %v218, %v216
  %v265 = vpack.c.b16 %v221, %v219
  %v266 = vpack.c.b16 %v222, %v220
  %v267 = vpack.c.b16 %v225, %v223
  %v268 = vpack.c.b16 %v226, %v224
  %v269 = vpack.c.b16 %v229, %v227
  %v270 = vpack.c.b16 %v230, %v228
  %v271 = vpack.c.b16 %v233, %v231
  %v272 = vpack.c.b16 %v234, %v232
  %v273 = vpack.c.b16 %v237, %v235
  %v274 = vpack.c.b16 %v238, %v236
  %v275 = vpack.c.b16 %v241, %v239
  %v276 = vpack.c.b16 %v242, %v240
  %v277 = vpack.c.b16 %v245, %v243
  %v278 = vpack.c.b16 %v246, %v244
  %v343 = vunpack.c.l.b16 %v55
  %v344 = vunpack.c.l.b16 %v56
  %v345 = vunpack.c.l.b16 %v57
  %v346 = vunpack.c.l.b16 %v58
  %v347 = vunpack.c.l.b16 %v59
  %v348 = vunpack.c.l.b16 %v60
  %v349 = vunpack.c.l.b16 %v61
  %v350 = vunpack.c.l.b16 %v62
  %v351 = vunpack.c.l.b16 %v63
  %v352 = vunpack.c.l.b16 %v64
  %v353 = vunpack.c.l.b16 %v65
  %v354 = vunpack.c.l.b16 %v66
  %v355 = vunpack.c.l.b16 %v67
  %v356 = vunpack.c.l.b16 %v68
  %v357 = vunpack.c.l.b16 %v69
  %v358 = vunpack.c.l.b16 %v70
  %v359 = vunpack.c.l.b16 %v71
  %v360 = vunpack.c.l.b16 %v72
  %v361 = vunpack.c.l.b16 %v73
  %v362 = vunpack.c.l.b16 %v74
  %v363 = vunpack.c.l.b16 %v75
  %v364 = vunpack.c.l.b16 %v76
  %v365 = vunpack.c.l.b16 %v77
  %v366 = vunpack.c.l.b16 %v78
  %v367 = vunpack.c.l.b16 %v79
  %v368 = vunpack.c.l.b16 %v80
  %v369 = vunpack.c.l.b16 %v81
  %v370 = vunpack.c.l.b16 %v82
  %v371 = vunpack.c.l.b16 %v83
  %v372 = vunpack.c.l.b16 %v84
  %v373 = vunpack.c.l.b16 %v85
  %v374 = vunpack.c.l.b16 %v86
  %v375 = vpack.c.b16 %v344, %v343
  %v376 = vpack.c.b16 %v346, %v345
  %v377 = vpack.c.b16 %v348, %v347
  %v378 = vpack.c.b16 %v350, %v349
  %v379 = vpack.c.b16 %v352, %v351
  %v380 = vpack.c.b16 %v354, %v353
  %v381 = vpack.c.b16 %v356, %v355
  %v382 = vpack.c.b16 %v358, %v357
  %v383 = vpack.c.b16 %v360, %v359
  %v384 = vpack.c.b16 %v362, %v361
  %v385 = vpack.c.b16 %v364, %v363
  %v386 = vpack.c.b16 %v366, %v365
  %v387 = vpack.c.b16 %v368, %v367
  %v388 = vpack.c.b16 %v370, %v369
  %v389 = vpack.c.b16 %v372, %v371
  %v390 = vpack.c.b16 %v374, %v373
  %407 = vmatprep.subr.bf16.mxu0 0
  %408 = vmatpush1.bf16.msra.mxu0 %v375
  %409 = vmatprep.subr.bf16.mxu0 0
  %410 = vmatpush1.bf16.msra.mxu0 %v376
  %411 = vmatprep.subr.bf16.mxu0 0
  %412 = vmatpush1.bf16.msra.mxu0 %v377
  %413 = vmatprep.subr.bf16.mxu0 0
  %414 = vmatpush1.bf16.msra.mxu0 %v378
  %415 = vmatprep.subr.bf16.mxu0 0
  %416 = vmatpush1.bf16.msra.mxu0 %v379
  %417 = vmatprep.subr.bf16.mxu0 0
  %418 = vmatpush1.bf16.msra.mxu0 %v380
  %419 = vmatprep.subr.bf16.mxu0 0
  %420 = vmatpush1.bf16.msra.mxu0 %v381
  %421 = vmatprep.subr.bf16.mxu0 0
  %422 = vmatpush1.bf16.msra.mxu0 %v382
  %423 = vmatprep.subr.bf16.mxu0 0
  %424 = vmatpush1.bf16.msra.mxu0 %v383
  %425 = vmatprep.subr.bf16.mxu0 0
  %426 = vmatpush1.bf16.msra.mxu0 %v384
  %427 = vmatprep.subr.bf16.mxu0 0
  %428 = vmatpush1.bf16.msra.mxu0 %v385
  %429 = vmatprep.subr.bf16.mxu0 0
  %430 = vmatpush1.bf16.msra.mxu0 %v386
  %431 = vmatprep.subr.bf16.mxu0 0
  %432 = vmatpush1.bf16.msra.mxu0 %v387
  %433 = vmatprep.subr.bf16.mxu0 0
  %434 = vmatpush1.bf16.msra.mxu0 %v388
  %435 = vmatprep.subr.bf16.mxu0 0
  %436 = vmatpush1.bf16.msra.mxu0 %v389
  %437 = vmatprep.subr.bf16.mxu0 0
  %438 = vmatpush1.bf16.msra.mxu0 %v390
  %439 = vmatprep.mubr.bf16.mxu0 %v248
  %440 = vmatmul.mubr.bf16.gmra.mrb[0].mxu0 %v247
  %v441 = vpop.f32.mrb[0].mxu0
  %v442 = vadd.f32 0.0, %v441
  %v443 = vpop.f32.mrb[0].mxu0
  %v444 = vpop.f32.mrb[0].mxu0
  %v445 = vadd.f32 0.0, %v444
  %v446 = vpop.f32.mrb[0].mxu0
  %447 = vmatprep.mubr.bf16.mxu0 %v250
  %448 = vmatmul.mubr.bf16.gmra.mrb[0].mxu0 %v249
  %v449 = vpop.f32.mrb[0].mxu0
  %v450 = vadd.f32 0.0, %v449
  %v451 = vpop.f32.mrb[0].mxu0
  %v452 = vpop.f32.mrb[0].mxu0
  %v453 = vadd.f32 0.0, %v452
  %v454 = vpop.f32.mrb[0].mxu0
  %455 = vmatprep.mubr.bf16.mxu0 %v252
  %456 = vmatmul.mubr.bf16.gmra.mrb[0].mxu0 %v251
  %v457 = vpop.f32.mrb[0].mxu0
  %v458 = vadd.f32 0.0, %v457
  %v459 = vpop.f32.mrb[0].mxu0
  %v460 = vpop.f32.mrb[0].mxu0
  %v461 = vadd.f32 0.0, %v460
  %v462 = vpop.f32.mrb[0].mxu0
  %463 = vmatprep.mubr.bf16.mxu0 %v254
  %464 = vmatmul.mubr.bf16.gmra.mrb[0].mxu0 %v253
  %v465 = vpop.f32.mrb[0].mxu0
  %v466 = vadd.f32 0.0, %v465
  %v467 = vpop.f32.mrb[0].mxu0
  %v468 = vpop.f32.mrb[0].mxu0
  %v469 = vadd.f32 0.0, %v468
  %v470 = vpop.f32.mrb[0].mxu0
  %471 = vmatprep.mubr.bf16.mxu0 %v256
  %472 = vmatmul.mubr.bf16.gmra.mrb[0].mxu0 %v255
  %v473 = vpop.f32.mrb[0].mxu0
  %v474 = vadd.f32 0.0, %v473
  %v475 = vpop.f32.mrb[0].mxu0
  %v476 = vpop.f32.mrb[0].mxu0
  %v477 = vadd.f32 0.0, %v476
  %v478 = vpop.f32.mrb[0].mxu0
  %479 = vmatprep.mubr.bf16.mxu0 %v258
  %480 = vmatmul.mubr.bf16.gmra.mrb[0].mxu0 %v257
  %v481 = vpop.f32.mrb[0].mxu0
  %v482 = vadd.f32 0.0, %v481
  %v483 = vpop.f32.mrb[0].mxu0
  %v484 = vpop.f32.mrb[0].mxu0
  %v485 = vadd.f32 0.0, %v484
  %v486 = vpop.f32.mrb[0].mxu0
  %487 = vmatprep.mubr.bf16.mxu0 %v260
  %488 = vmatmul.mubr.bf16.gmra.mrb[0].mxu0 %v259
  %v489 = vpop.f32.mrb[0].mxu0
  %v490 = vadd.f32 0.0, %v489
  %v491 = vpop.f32.mrb[0].mxu0
  %v492 = vpop.f32.mrb[0].mxu0
  %v493 = vadd.f32 0.0, %v492
  %v494 = vpop.f32.mrb[0].mxu0
  %495 = vmatprep.mubr.bf16.mxu0 %v262
  %496 = vmatmul.mubr.bf16.gmra.mrb[0].mxu0 %v261
  %v497 = vpop.f32.mrb[0].mxu0
  %v498 = vadd.f32 0.0, %v497
  %v499 = vpop.f32.mrb[0].mxu0
  %v500 = vpop.f32.mrb[0].mxu0
  %v501 = vadd.f32 0.0, %v500
  %v502 = vpop.f32.mrb[0].mxu0
  %503 = vmatprep.mubr.bf16.mxu0 %v264
  %504 = vmatmul.mubr.bf16.gmra.mrb[0].mxu0 %v263
  %v505 = vpop.f32.mrb[0].mxu0
  %v506 = vadd.f32 0.0, %v505
  %v507 = vpop.f32.mrb[0].mxu0
  %v508 = vpop.f32.mrb[0].mxu0
  %v509 = vadd.f32 0.0, %v508
  %v510 = vpop.f32.mrb[0].mxu0
  %511 = vmatprep.mubr.bf16.mxu0 %v266
  %512 = vmatmul.mubr.bf16.gmra.mrb[0].mxu0 %v265
  %v513 = vpop.f32.mrb[0].mxu0
  %v514 = vadd.f32 0.0, %v513
  %v515 = vpop.f32.mrb[0].mxu0
  %v516 = vpop.f32.mrb[0].mxu0
  %v517 = vadd.f32 0.0, %v516
  %v518 = vpop.f32.mrb[0].mxu0
  %519 = vmatprep.mubr.bf16.mxu0 %v268
  %520 = vmatmul.mubr.bf16.gmra.mrb[0].mxu0 %v267
  %v521 = vpop.f32.mrb[0].mxu0
  %v522 = vadd.f32 0.0, %v521
  %v523 = vpop.f32.mrb[0].mxu0
  %v524 = vpop.f32.mrb[0].mxu0
  %v525 = vadd.f32 0.0, %v524
  %v526 = vpop.f32.mrb[0].mxu0
  %527 = vmatprep.mubr.bf16.mxu0 %v270
  %528 = vmatmul.mubr.bf16.gmra.mrb[0].mxu0 %v269
  %v529 = vpop.f32.mrb[0].mxu0
  %v530 = vadd.f32 0.0, %v529
  %v531 = vpop.f32.mrb[0].mxu0
  %v532 = vpop.f32.mrb[0].mxu0
  %v533 = vadd.f32 0.0, %v532
  %v534 = vpop.f32.mrb[0].mxu0
  %535 = vmatprep.mubr.bf16.mxu0 %v272
  %536 = vmatmul.mubr.bf16.gmra.mrb[0].mxu0 %v271
  %v537 = vpop.f32.mrb[0].mxu0
  %v538 = vadd.f32 0.0, %v537
  %v539 = vpop.f32.mrb[0].mxu0
  %v540 = vpop.f32.mrb[0].mxu0
  %v541 = vadd.f32 0.0, %v540
  %v542 = vpop.f32.mrb[0].mxu0
  %543 = vmatprep.mubr.bf16.mxu0 %v274
  %544 = vmatmul.mubr.bf16.gmra.mrb[0].mxu0 %v273
  %v545 = vpop.f32.mrb[0].mxu0
  %v546 = vadd.f32 0.0, %v545
  %v547 = vpop.f32.mrb[0].mxu0
  %v548 = vpop.f32.mrb[0].mxu0
  %v549 = vadd.f32 0.0, %v548
  %v550 = vpop.f32.mrb[0].mxu0
  %551 = vmatprep.mubr.bf16.mxu0 %v276
  %552 = vmatmul.mubr.bf16.gmra.mrb[0].mxu0 %v275
  %v553 = vpop.f32.mrb[0].mxu0
  %v554 = vadd.f32 0.0, %v553
  %v555 = vpop.f32.mrb[0].mxu0
  %v556 = vpop.f32.mrb[0].mxu0
  %v557 = vadd.f32 0.0, %v556
  %v558 = vpop.f32.mrb[0].mxu0
  %559 = vmatprep.mubr.bf16.mxu0 %v278
  %560 = vmatmul.mubr.bf16.gmra.mrb[0].mxu0 %v277
  %v561 = vpop.f32.mrb[0].mxu0
  %v562 = vadd.f32 0.0, %v561
  %v563 = vpop.f32.mrb[0].mxu0
  %v564 = vpop.f32.mrb[0].mxu0
  %v565 = vadd.f32 0.0, %v564
  %v566 = vpop.f32.mrb[0].mxu0
  %567 = vdwg.mxu0
  %v568 = vadd.f32 %v87, %v442
  %v569 = vadd.f32 %v88, %v445
  %v570 = vadd.f32 %v89, %v450
  %v571 = vadd.f32 %v90, %v453
  %v572 = vadd.f32 %v91, %v458
  %v573 = vadd.f32 %v92, %v461
  %v574 = vadd.f32 %v93, %v466
  %v575 = vadd.f32 %v94, %v469
  %v576 = vadd.f32 %v95, %v474
  %v577 = vadd.f32 %v96, %v477
  %v578 = vadd.f32 %v97, %v482
  %v579 = vadd.f32 %v98, %v485
  %v580 = vadd.f32 %v99, %v490
  %v581 = vadd.f32 %v100, %v493
  %v582 = vadd.f32 %v101, %v498
  %v583 = vadd.f32 %v102, %v501
  %v584 = vadd.f32 %v103, %v506
  %v585 = vadd.f32 %v104, %v509
  %v586 = vadd.f32 %v105, %v514
  %v587 = vadd.f32 %v106, %v517
  %v588 = vadd.f32 %v107, %v522
  %v589 = vadd.f32 %v108, %v525
  %v590 = vadd.f32 %v109, %v530
  %v591 = vadd.f32 %v110, %v533
  %v592 = vadd.f32 %v111, %v538
  %v593 = vadd.f32 %v112, %v541
  %v594 = vadd.f32 %v113, %v546
  %v595 = vadd.f32 %v114, %v549
  %v596 = vadd.f32 %v115, %v554
  %v597 = vadd.f32 %v116, %v557
  %v598 = vadd.f32 %v117, %v562
  %v599 = vadd.f32 %v118, %v565
  %600 = vst [vmem:[%s2] sm:$0xff] %v568
  %601 = vst [vmem:[%s2 + $0x8] sm:$0xff] %v569
  %602 = vst [vmem:[%s2 + $0x10] sm:$0xff] %v570
  %603 = vst [vmem:[%s2 + $0x18] sm:$0xff] %v571
  %604 = vst [vmem:[%s2 + $0x20] sm:$0xff] %v572
  %605 = vst [vmem:[%s2 + $0x28] sm:$0xff] %v573
  %606 = vst [vmem:[%s2 + $0x30] sm:$0xff] %v574
  %607 = vst [vmem:[%s2 + $0x38] sm:$0xff] %v575
  %608 = vst [vmem:[%s2 + $0x40] sm:$0xff] %v576
  %609 = vst [vmem:[%s2 + $0x48] sm:$0xff] %v577
  %610 = vst [vmem:[%s2 + $0x50] sm:$0xff] %v578
  %611 = vst [vmem:[%s2 + $0x58] sm:$0xff] %v579
  %612 = vst [vmem:[%s2 + $0x60] sm:$0xff] %v580
  %613 = vst [vmem:[%s2 + $0x68] sm:$0xff] %v581
  %614 = vst [vmem:[%s2 + $0x70] sm:$0xff] %v582
  %615 = vst [vmem:[%s2 + $0x78] sm:$0xff] %v583
  %616 = vst [vmem:[%s2 + $0x80] sm:$0xff] %v584
  %617 = vst [vmem:[%s2 + $0x88] sm:$0xff] %v585
  %618 = vst [vmem:[%s2 + $0x90] sm:$0xff] %v586
  %619 = vst [vmem:[%s2 + $0x98] sm:$0xff] %v587
  %620 = vst [vmem:[%s2 + $0xa0] sm:$0xff] %v588
  %621 = vst [vmem:[%s2 + $0xa8] sm:$0xff] %v589
  %622 = vst [vmem:[%s2 + $0xb0] sm:$0xff] %v590
  %623 = vst [vmem:[%s2 + $0xb8] sm:$0xff] %v591
  %624 = vst [vmem:[%s2 + $0xc0] sm:$0xff] %v592
  %625 = vst [vmem:[%s2 + $0xc8] sm:$0xff] %v593
  %626 = vst [vmem:[%s2 + $0xd0] sm:$0xff] %v594
  %627 = vst [vmem:[%s2 + $0xd8] sm:$0xff] %v595
  %628 = vst [vmem:[%s2 + $0xe0] sm:$0xff] %v596
  %629 = vst [vmem:[%s2 + $0xe8] sm:$0xff] %v597
  %630 = vst [vmem:[%s2 + $0xf0] sm:$0xff] %v598
  %631 = vst [vmem:[%s2 + $0xf8] sm:$0xff] %v599
  // Predicated region
  $region14: #{gcn_module_forward.6} parent=0 // pred_check
    %p632 = pneg %p14
  $region15: #{gcn_module_forward.6} parent=0 // pred_check_branch
    %634 = sbr.rel (%p632) target = $region17
  $region16: #{gcn_module_forward.6} parent=0 // pred_region
    %v635 = vld [vmem:[%s2] sm:$0xff]
    %v636 = vld [vmem:[%s2 + $0x8] sm:$0xff]
    %v637 = vld [vmem:[%s2 + $0x10] sm:$0xff]
    %v638 = vld [vmem:[%s2 + $0x18] sm:$0xff]
    %v639 = vld [vmem:[%s2 + $0x20] sm:$0xff]
    %v640 = vld [vmem:[%s2 + $0x28] sm:$0xff]
    %v641 = vld [vmem:[%s2 + $0x30] sm:$0xff]
    %v642 = vld [vmem:[%s2 + $0x38] sm:$0xff]
    %v643 = vld [vmem:[%s2 + $0x40] sm:$0xff]
    %v644 = vld [vmem:[%s2 + $0x48] sm:$0xff]
    %v645 = vld [vmem:[%s2 + $0x50] sm:$0xff]
    %v646 = vld [vmem:[%s2 + $0x58] sm:$0xff]
    %v647 = vld [vmem:[%s2 + $0x60] sm:$0xff]
    %v648 = vld [vmem:[%s2 + $0x68] sm:$0xff]
    %v649 = vld [vmem:[%s2 + $0x70] sm:$0xff]
    %v650 = vld [vmem:[%s2 + $0x78] sm:$0xff]
    %v651 = vld [vmem:[%s2 + $0x80] sm:$0xff]
    %v652 = vld [vmem:[%s2 + $0x88] sm:$0xff]
    %v653 = vld [vmem:[%s2 + $0x90] sm:$0xff]
    %v654 = vld [vmem:[%s2 + $0x98] sm:$0xff]
    %v655 = vld [vmem:[%s2 + $0xa0] sm:$0xff]
    %v656 = vld [vmem:[%s2 + $0xa8] sm:$0xff]
    %v657 = vld [vmem:[%s2 + $0xb0] sm:$0xff]
    %v658 = vld [vmem:[%s2 + $0xb8] sm:$0xff]
    %v659 = vld [vmem:[%s2 + $0xc0] sm:$0xff]
    %v660 = vld [vmem:[%s2 + $0xc8] sm:$0xff]
    %v661 = vld [vmem:[%s2 + $0xd0] sm:$0xff]
    %v662 = vld [vmem:[%s2 + $0xd8] sm:$0xff]
    %v663 = vld [vmem:[%s2 + $0xe0] sm:$0xff]
    %v664 = vld [vmem:[%s2 + $0xe8] sm:$0xff]
    %v665 = vld [vmem:[%s2 + $0xf0] sm:$0xff]
    %v666 = vld [vmem:[%s2 + $0xf8] sm:$0xff]
    %v667 = vpack.c.bf16 %v636, %v635
    %v668 = vpack.c.bf16 %v638, %v637
    %v669 = vpack.c.bf16 %v640, %v639
    %v670 = vpack.c.bf16 %v642, %v641
    %v671 = vpack.c.bf16 %v644, %v643
    %v672 = vpack.c.bf16 %v646, %v645
    %v673 = vpack.c.bf16 %v648, %v647
    %v674 = vpack.c.bf16 %v650, %v649
    %v675 = vpack.c.bf16 %v652, %v651
    %v676 = vpack.c.bf16 %v654, %v653
    %v677 = vpack.c.bf16 %v656, %v655
    %v678 = vpack.c.bf16 %v658, %v657
    %v679 = vpack.c.bf16 %v660, %v659
    %v680 = vpack.c.bf16 %v662, %v661
    %v681 = vpack.c.bf16 %v664, %v663
    %v682 = vpack.c.bf16 %v666, %v665
    %v699 = vunpack.c.l.b16 %v667
    %v700 = vunpack.c.h.b16 %v667
    %v701 = vunpack.c.l.b16 %v668
    %v702 = vunpack.c.h.b16 %v668
    %v703 = vunpack.c.l.b16 %v669
    %v704 = vunpack.c.h.b16 %v669
    %v705 = vunpack.c.l.b16 %v670
    %v706 = vunpack.c.h.b16 %v670
    %v707 = vunpack.c.l.b16 %v671
    %v708 = vunpack.c.h.b16 %v671
    %v709 = vunpack.c.l.b16 %v672
    %v710 = vunpack.c.h.b16 %v672
    %v711 = vunpack.c.l.b16 %v673
    %v712 = vunpack.c.h.b16 %v673
    %v713 = vunpack.c.l.b16 %v674
    %v714 = vunpack.c.h.b16 %v674
    %v715 = vunpack.c.l.b16 %v675
    %v716 = vunpack.c.h.b16 %v675
    %v717 = vunpack.c.l.b16 %v676
    %v718 = vunpack.c.h.b16 %v676
    %v719 = vunpack.c.l.b16 %v677
    %v720 = vunpack.c.h.b16 %v677
    %v721 = vunpack.c.l.b16 %v678
    %v722 = vunpack.c.h.b16 %v678
    %v723 = vunpack.c.l.b16 %v679
    %v724 = vunpack.c.h.b16 %v679
    %v725 = vunpack.c.l.b16 %v680
    %v726 = vunpack.c.h.b16 %v680
    %v727 = vunpack.c.l.b16 %v681
    %v728 = vunpack.c.h.b16 %v681
    %v729 = vunpack.c.l.b16 %v682
    %v730 = vunpack.c.h.b16 %v682
    %v731 = vpack.c.b16 %v699, %v699
    %v732 = vpack.c.b16 %v700, %v700
    %v733 = vpack.c.b16 %v701, %v701
    %v734 = vpack.c.b16 %v702, %v702
    %v735 = vpack.c.b16 %v703, %v703
    %v736 = vpack.c.b16 %v704, %v704
    %v737 = vpack.c.b16 %v705, %v705
    %v738 = vpack.c.b16 %v706, %v706
    %v739 = vpack.c.b16 %v707, %v707
    %v740 = vpack.c.b16 %v708, %v708
    %v741 = vpack.c.b16 %v709, %v709
    %v742 = vpack.c.b16 %v710, %v710
    %v743 = vpack.c.b16 %v711, %v711
    %v744 = vpack.c.b16 %v712, %v712
    %v745 = vpack.c.b16 %v713, %v713
    %v746 = vpack.c.b16 %v714, %v714
    %v747 = vpack.c.b16 %v715, %v715
    %v748 = vpack.c.b16 %v716, %v716
    %v749 = vpack.c.b16 %v717, %v717
    %v750 = vpack.c.b16 %v718, %v718
    %v751 = vpack.c.b16 %v719, %v719
    %v752 = vpack.c.b16 %v720, %v720
    %v753 = vpack.c.b16 %v721, %v721
    %v754 = vpack.c.b16 %v722, %v722
    %v755 = vpack.c.b16 %v723, %v723
    %v756 = vpack.c.b16 %v724, %v724
    %v757 = vpack.c.b16 %v725, %v725
    %v758 = vpack.c.b16 %v726, %v726
    %v759 = vpack.c.b16 %v727, %v727
    %v760 = vpack.c.b16 %v728, %v728
    %v761 = vpack.c.b16 %v729, %v729
    %v762 = vpack.c.b16 %v730, %v730
    %795 = vst [vmem:[%s3] sm:$0xf] %v731
    %796 = vst [vmem:[%s3 + $0x4] sm:$0xf] %v732
    %797 = vst [vmem:[%s3 + $0x8] sm:$0xf] %v733
    %798 = vst [vmem:[%s3 + $0xc] sm:$0xf] %v734
    %799 = vst [vmem:[%s3 + $0x10] sm:$0xf] %v735
    %800 = vst [vmem:[%s3 + $0x14] sm:$0xf] %v736
    %801 = vst [vmem:[%s3 + $0x18] sm:$0xf] %v737
    %802 = vst [vmem:[%s3 + $0x1c] sm:$0xf] %v738
    %803 = vst [vmem:[%s3 + $0x20] sm:$0xf] %v739
    %804 = vst [vmem:[%s3 + $0x24] sm:$0xf] %v740
    %805 = vst [vmem:[%s3 + $0x28] sm:$0xf] %v741
    %806 = vst [vmem:[%s3 + $0x2c] sm:$0xf] %v742
    %807 = vst [vmem:[%s3 + $0x30] sm:$0xf] %v743
    %808 = vst [vmem:[%s3 + $0x34] sm:$0xf] %v744
    %809 = vst [vmem:[%s3 + $0x38] sm:$0xf] %v745
    %810 = vst [vmem:[%s3 + $0x3c] sm:$0xf] %v746
    %811 = vst [vmem:[%s3 + $0x40] sm:$0xf] %v747
    %812 = vst [vmem:[%s3 + $0x44] sm:$0xf] %v748
    %813 = vst [vmem:[%s3 + $0x48] sm:$0xf] %v749
    %814 = vst [vmem:[%s3 + $0x4c] sm:$0xf] %v750
    %815 = vst [vmem:[%s3 + $0x50] sm:$0xf] %v751
    %816 = vst [vmem:[%s3 + $0x54] sm:$0xf] %v752
    %817 = vst [vmem:[%s3 + $0x58] sm:$0xf] %v753
    %818 = vst [vmem:[%s3 + $0x5c] sm:$0xf] %v754
    %819 = vst [vmem:[%s3 + $0x60] sm:$0xf] %v755
    %820 = vst [vmem:[%s3 + $0x64] sm:$0xf] %v756
    %821 = vst [vmem:[%s3 + $0x68] sm:$0xf] %v757
    %822 = vst [vmem:[%s3 + $0x6c] sm:$0xf] %v758
    %823 = vst [vmem:[%s3 + $0x70] sm:$0xf] %v759
    %824 = vst [vmem:[%s3 + $0x74] sm:$0xf] %v760
    %825 = vst [vmem:[%s3 + $0x78] sm:$0xf] %v761
    %826 = vst [vmem:[%s3 + $0x7c] sm:$0xf] %v762
  $region17: #{gcn_module_forward.6} parent=0 // pred_fallthru
    _
  // Predicated region
  $region18: #{gcn_module_forward.6} parent=0 // pred_check
    _
  $region19: #{gcn_module_forward.6} parent=0 // pred_check_branch
    %828 = sbr.rel (0) target = $region21
  $region20: #{gcn_module_forward.6} parent=0 // pred_region
    _
  $region21: #{gcn_module_forward.6} parent=0 // pred_fallthru
    _
  // Predicated region
  $region22: #{gcn_module_forward.6} parent=0 // pred_check
    _
  $region23: #{gcn_module_forward.6} parent=0 // pred_check_branch
    %830 = sbr.rel (0) target = $region25
  $region24: #{gcn_module_forward.6} parent=0 // pred_region
    _
  $region25: #{gcn_module_forward.6} parent=0 // pred_fallthru
    _
  // Predicated region
  $region26: #{gcn_module_forward.6} parent=0 // pred_check
    _
  $region27: #{gcn_module_forward.6} parent=0 // pred_check_branch
    %832 = sbr.rel (0) target = $region29
  $region28: #{gcn_module_forward.6} parent=0 // pred_region
    _
  $region29: #{gcn_module_forward.6} parent=0 // pred_fallthru
    _
  // Predicated region
  $region30: #{gcn_module_forward.6} parent=0 // pred_check
    _
  $region31: #{gcn_module_forward.6} parent=0 // pred_check_branch
    %834 = sbr.rel (0) target = $region33
  $region32: #{gcn_module_forward.6} parent=0 // pred_region
    _
  $region33: #{gcn_module_forward.6} parent=0 // pred_fallthru
    _

// kernel: gcn_module_forward.7
$region0: #{gcn_module_forward.7}
  #allocation0 [shape = 'u32[]', space=smem, size = 0x4, offset = 0x4, fixed_abs, tag = 'smem constant byte address 0x4 - core index']
  #allocation1 [shape = 'u32[144,128]{1,0:T(1,128)}', space=vmem, size = 0x12000, scoped, tag = 'internal scratch']
  %s0 = inlined_call_operand.vmem [shape: bf16[256,256], index: 0, kind: input, shape index: {}]
  %s1 = inlined_call_operand.vmem [shape: bf16[256,128], index: 1, kind: input, shape index: {}]
  %s2 = inlined_call_operand.vmem [shape: f32[256,128], index: 2, kind: input, shape index: {}]
  %s3 = inlined_call_operand.vmem [shape: f32[256,128], index: 3, kind: input, shape index: {}]
  %s4 = inlined_call_operand.vmem [shape: f32[256,128], index: 4, kind: output, shape index: {}]
  %s5 = sld [smem:[#allocation0]]
  $region34: #{gcn_module_forward.7} parent=0
    _
  %s7 = ssub.s32 1, %s5
  %s8 = scalar_select 0, %s7, %s5
  // Predicated region
  $region2: #{gcn_module_forward.7} parent=0 // pred_check
    _
  $region3: #{gcn_module_forward.7} parent=0 // pred_check_branch
    %10 = sbr.rel (0) target = $region5
  $region4: #{gcn_module_forward.7} parent=0 // pred_region
    _
  $region5: #{gcn_module_forward.7} parent=0 // pred_fallthru
    _
  // Predicated region
  $region6: #{gcn_module_forward.7} parent=0 // pred_check
    _
  $region7: #{gcn_module_forward.7} parent=0 // pred_check_branch
    %12 = sbr.rel (0) target = $region9
  $region8: #{gcn_module_forward.7} parent=0 // pred_region
    _
  $region9: #{gcn_module_forward.7} parent=0 // pred_fallthru
    _
  // Predicated region
  $region10: #{gcn_module_forward.7} parent=0 // pred_check
    _
  $region11: #{gcn_module_forward.7} parent=0 // pred_check_branch
    %14 = sbr.rel (0) target = $region13
  $region12: #{gcn_module_forward.7} parent=0 // pred_region
    _
  $region13: #{gcn_module_forward.7} parent=0 // pred_fallthru
    _
  // Predicated region
  $region14: #{gcn_module_forward.7} parent=0 // pred_check
    _
  $region15: #{gcn_module_forward.7} parent=0 // pred_check_branch
    %16 = sbr.rel (0) target = $region17
  $region16: #{gcn_module_forward.7} parent=0 // pred_region
    _
  $region17: #{gcn_module_forward.7} parent=0 // pred_fallthru
    _
  %p18 = scmp.eq.s32.totalorder 0, 0
  // Predicated region
  $region18: #{gcn_module_forward.7} parent=0 // pred_check
    %p19 = pneg %p18
  $region19: #{gcn_module_forward.7} parent=0 // pred_check_branch
    %21 = sbr.rel (%p19) target = $region21
  $region20: #{gcn_module_forward.7} parent=0 // pred_region
    %22 = vst [vmem:[%s4] sm:$0xff] 0.0
    %23 = vst [vmem:[%s4 + $0x8] sm:$0xff] 0.0
    %24 = vst [vmem:[%s4 + $0x10] sm:$0xff] 0.0
    %25 = vst [vmem:[%s4 + $0x18] sm:$0xff] 0.0
    %26 = vst [vmem:[%s4 + $0x20] sm:$0xff] 0.0
    %27 = vst [vmem:[%s4 + $0x28] sm:$0xff] 0.0
    %28 = vst [vmem:[%s4 + $0x30] sm:$0xff] 0.0
    %29 = vst [vmem:[%s4 + $0x38] sm:$0xff] 0.0
    %30 = vst [vmem:[%s4 + $0x40] sm:$0xff] 0.0
    %31 = vst [vmem:[%s4 + $0x48] sm:$0xff] 0.0
    %32 = vst [vmem:[%s4 + $0x50] sm:$0xff] 0.0
    %33 = vst [vmem:[%s4 + $0x58] sm:$0xff] 0.0
    %34 = vst [vmem:[%s4 + $0x60] sm:$0xff] 0.0
    %35 = vst [vmem:[%s4 + $0x68] sm:$0xff] 0.0
    %36 = vst [vmem:[%s4 + $0x70] sm:$0xff] 0.0
    %37 = vst [vmem:[%s4 + $0x78] sm:$0xff] 0.0
    %38 = vst [vmem:[%s4 + $0x80] sm:$0xff] 0.0
    %39 = vst [vmem:[%s4 + $0x88] sm:$0xff] 0.0
    %40 = vst [vmem:[%s4 + $0x90] sm:$0xff] 0.0
    %41 = vst [vmem:[%s4 + $0x98] sm:$0xff] 0.0
    %42 = vst [vmem:[%s4 + $0xa0] sm:$0xff] 0.0
    %43 = vst [vmem:[%s4 + $0xa8] sm:$0xff] 0.0
    %44 = vst [vmem:[%s4 + $0xb0] sm:$0xff] 0.0
    %45 = vst [vmem:[%s4 + $0xb8] sm:$0xff] 0.0
    %46 = vst [vmem:[%s4 + $0xc0] sm:$0xff] 0.0
    %47 = vst [vmem:[%s4 + $0xc8] sm:$0xff] 0.0
    %48 = vst [vmem:[%s4 + $0xd0] sm:$0xff] 0.0
    %49 = vst [vmem:[%s4 + $0xd8] sm:$0xff] 0.0
    %50 = vst [vmem:[%s4 + $0xe0] sm:$0xff] 0.0
    %51 = vst [vmem:[%s4 + $0xe8] sm:$0xff] 0.0
    %52 = vst [vmem:[%s4 + $0xf0] sm:$0xff] 0.0
    %53 = vst [vmem:[%s4 + $0xf8] sm:$0xff] 0.0
  $region21: #{gcn_module_forward.7} parent=0 // pred_fallthru
    _
  %s54 = smul.u32 0, 256
  %s55 = sshra.s32 %s54, 3
  %s56 = sand.u32 %s54, 7
  %s57 = smul.addr %s55, 4
  %s58 = scalar_lea.vmem %s1, %s57
  %v59 = vld [vmem:[%s58] sm:$0xf]
  %v60 = vld [vmem:[%s58 + $0x4] sm:$0xf]
  %v61 = vld [vmem:[%s58 + $0x8] sm:$0xf]
  %v62 = vld [vmem:[%s58 + $0xc] sm:$0xf]
  %v63 = vld [vmem:[%s58 + $0x10] sm:$0xf]
  %v64 = vld [vmem:[%s58 + $0x14] sm:$0xf]
  %v65 = vld [vmem:[%s58 + $0x18] sm:$0xf]
  %v66 = vld [vmem:[%s58 + $0x1c] sm:$0xf]
  %v67 = vld [vmem:[%s58 + $0x20] sm:$0xf]
  %v68 = vld [vmem:[%s58 + $0x24] sm:$0xf]
  %v69 = vld [vmem:[%s58 + $0x28] sm:$0xf]
  %v70 = vld [vmem:[%s58 + $0x2c] sm:$0xf]
  %v71 = vld [vmem:[%s58 + $0x30] sm:$0xf]
  %v72 = vld [vmem:[%s58 + $0x34] sm:$0xf]
  %v73 = vld [vmem:[%s58 + $0x38] sm:$0xf]
  %v74 = vld [vmem:[%s58 + $0x3c] sm:$0xf]
  %v75 = vld [vmem:[%s58 + $0x40] sm:$0xf]
  %v76 = vld [vmem:[%s58 + $0x44] sm:$0xf]
  %v77 = vld [vmem:[%s58 + $0x48] sm:$0xf]
  %v78 = vld [vmem:[%s58 + $0x4c] sm:$0xf]
  %v79 = vld [vmem:[%s58 + $0x50] sm:$0xf]
  %v80 = vld [vmem:[%s58 + $0x54] sm:$0xf]
  %v81 = vld [vmem:[%s58 + $0x58] sm:$0xf]
  %v82 = vld [vmem:[%s58 + $0x5c] sm:$0xf]
  %v83 = vld [vmem:[%s58 + $0x60] sm:$0xf]
  %v84 = vld [vmem:[%s58 + $0x64] sm:$0xf]
  %v85 = vld [vmem:[%s58 + $0x68] sm:$0xf]
  %v86 = vld [vmem:[%s58 + $0x6c] sm:$0xf]
  %v87 = vld [vmem:[%s58 + $0x70] sm:$0xf]
  %v88 = vld [vmem:[%s58 + $0x74] sm:$0xf]
  %v89 = vld [vmem:[%s58 + $0x78] sm:$0xf]
  %v90 = vld [vmem:[%s58 + $0x7c] sm:$0xf]
  %v91 = vld [vmem:[%s4] sm:$0xff]
  %v92 = vld [vmem:[%s4 + $0x8] sm:$0xff]
  %v93 = vld [vmem:[%s4 + $0x10] sm:$0xff]
  %v94 = vld [vmem:[%s4 + $0x18] sm:$0xff]
  %v95 = vld [vmem:[%s4 + $0x20] sm:$0xff]
  %v96 = vld [vmem:[%s4 + $0x28] sm:$0xff]
  %v97 = vld [vmem:[%s4 + $0x30] sm:$0xff]
  %v98 = vld [vmem:[%s4 + $0x38] sm:$0xff]
  %v99 = vld [vmem:[%s4 + $0x40] sm:$0xff]
  %v100 = vld [vmem:[%s4 + $0x48] sm:$0xff]
  %v101 = vld [vmem:[%s4 + $0x50] sm:$0xff]
  %v102 = vld [vmem:[%s4 + $0x58] sm:$0xff]
  %v103 = vld [vmem:[%s4 + $0x60] sm:$0xff]
  %v104 = vld [vmem:[%s4 + $0x68] sm:$0xff]
  %v105 = vld [vmem:[%s4 + $0x70] sm:$0xff]
  %v106 = vld [vmem:[%s4 + $0x78] sm:$0xff]
  %v107 = vld [vmem:[%s4 + $0x80] sm:$0xff]
  %v108 = vld [vmem:[%s4 + $0x88] sm:$0xff]
  %v109 = vld [vmem:[%s4 + $0x90] sm:$0xff]
  %v110 = vld [vmem:[%s4 + $0x98] sm:$0xff]
  %v111 = vld [vmem:[%s4 + $0xa0] sm:$0xff]
  %v112 = vld [vmem:[%s4 + $0xa8] sm:$0xff]
  %v113 = vld [vmem:[%s4 + $0xb0] sm:$0xff]
  %v114 = vld [vmem:[%s4 + $0xb8] sm:$0xff]
  %v115 = vld [vmem:[%s4 + $0xc0] sm:$0xff]
  %v116 = vld [vmem:[%s4 + $0xc8] sm:$0xff]
  %v117 = vld [vmem:[%s4 + $0xd0] sm:$0xff]
  %v118 = vld [vmem:[%s4 + $0xd8] sm:$0xff]
  %v119 = vld [vmem:[%s4 + $0xe0] sm:$0xff]
  %v120 = vld [vmem:[%s4 + $0xe8] sm:$0xff]
  %v121 = vld [vmem:[%s4 + $0xf0] sm:$0xff]
  %v122 = vld [vmem:[%s4 + $0xf8] sm:$0xff]
  %v123 = vld [vmem:[%s0] sm:$0xff]
  %v124 = vld [vmem:[%s0 + $0x8] sm:$0xff]
  %v125 = vld [vmem:[%s0 + $0x10] sm:$0xff]
  %v126 = vld [vmem:[%s0 + $0x18] sm:$0xff]
  %v127 = vld [vmem:[%s0 + $0x20] sm:$0xff]
  %v128 = vld [vmem:[%s0 + $0x28] sm:$0xff]
  %v129 = vld [vmem:[%s0 + $0x30] sm:$0xff]
  %v130 = vld [vmem:[%s0 + $0x38] sm:$0xff]
  %v131 = vld [vmem:[%s0 + $0x40] sm:$0xff]
  %v132 = vld [vmem:[%s0 + $0x48] sm:$0xff]
  %v133 = vld [vmem:[%s0 + $0x50] sm:$0xff]
  %v134 = vld [vmem:[%s0 + $0x58] sm:$0xff]
  %v135 = vld [vmem:[%s0 + $0x60] sm:$0xff]
  %v136 = vld [vmem:[%s0 + $0x68] sm:$0xff]
  %v137 = vld [vmem:[%s0 + $0x70] sm:$0xff]
  %v138 = vld [vmem:[%s0 + $0x78] sm:$0xff]
  %v139 = vld [vmem:[%s0 + $0x80] sm:$0xff]
  %v140 = vld [vmem:[%s0 + $0x88] sm:$0xff]
  %v141 = vld [vmem:[%s0 + $0x90] sm:$0xff]
  %v142 = vld [vmem:[%s0 + $0x98] sm:$0xff]
  %v143 = vld [vmem:[%s0 + $0xa0] sm:$0xff]
  %v144 = vld [vmem:[%s0 + $0xa8] sm:$0xff]
  %v145 = vld [vmem:[%s0 + $0xb0] sm:$0xff]
  %v146 = vld [vmem:[%s0 + $0xb8] sm:$0xff]
  %v147 = vld [vmem:[%s0 + $0xc0] sm:$0xff]
  %v148 = vld [vmem:[%s0 + $0xc8] sm:$0xff]
  %v149 = vld [vmem:[%s0 + $0xd0] sm:$0xff]
  %v150 = vld [vmem:[%s0 + $0xd8] sm:$0xff]
  %v151 = vld [vmem:[%s0 + $0xe0] sm:$0xff]
  %v152 = vld [vmem:[%s0 + $0xe8] sm:$0xff]
  %v153 = vld [vmem:[%s0 + $0xf0] sm:$0xff]
  %v154 = vld [vmem:[%s0 + $0xf8] sm:$0xff]
  %v187 = vunpack.c.l.b16 %v123
  %v188 = vunpack.c.h.b16 %v123
  %v189 = vunpack.c.l.b16 %v124
  %v190 = vunpack.c.h.b16 %v124
  %v191 = vunpack.c.l.b16 %v125
  %v192 = vunpack.c.h.b16 %v125
  %v193 = vunpack.c.l.b16 %v126
  %v194 = vunpack.c.h.b16 %v126
  %v195 = vunpack.c.l.b16 %v127
  %v196 = vunpack.c.h.b16 %v127
  %v197 = vunpack.c.l.b16 %v128
  %v198 = vunpack.c.h.b16 %v128
  %v199 = vunpack.c.l.b16 %v129
  %v200 = vunpack.c.h.b16 %v129
  %v201 = vunpack.c.l.b16 %v130
  %v202 = vunpack.c.h.b16 %v130
  %v203 = vunpack.c.l.b16 %v131
  %v204 = vunpack.c.h.b16 %v131
  %v205 = vunpack.c.l.b16 %v132
  %v206 = vunpack.c.h.b16 %v132
  %v207 = vunpack.c.l.b16 %v133
  %v208 = vunpack.c.h.b16 %v133
  %v209 = vunpack.c.l.b16 %v134
  %v210 = vunpack.c.h.b16 %v134
  %v211 = vunpack.c.l.b16 %v135
  %v212 = vunpack.c.h.b16 %v135
  %v213 = vunpack.c.l.b16 %v136
  %v214 = vunpack.c.h.b16 %v136
  %v215 = vunpack.c.l.b16 %v137
  %v216 = vunpack.c.h.b16 %v137
  %v217 = vunpack.c.l.b16 %v138
  %v218 = vunpack.c.h.b16 %v138
  %v219 = vunpack.c.l.b16 %v139
  %v220 = vunpack.c.h.b16 %v139
  %v221 = vunpack.c.l.b16 %v140
  %v222 = vunpack.c.h.b16 %v140
  %v223 = vunpack.c.l.b16 %v141
  %v224 = vunpack.c.h.b16 %v141
  %v225 = vunpack.c.l.b16 %v142
  %v226 = vunpack.c.h.b16 %v142
  %v227 = vunpack.c.l.b16 %v143
  %v228 = vunpack.c.h.b16 %v143
  %v229 = vunpack.c.l.b16 %v144
  %v230 = vunpack.c.h.b16 %v144
  %v231 = vunpack.c.l.b16 %v145
  %v232 = vunpack.c.h.b16 %v145
  %v233 = vunpack.c.l.b16 %v146
  %v234 = vunpack.c.h.b16 %v146
  %v235 = vunpack.c.l.b16 %v147
  %v236 = vunpack.c.h.b16 %v147
  %v237 = vunpack.c.l.b16 %v148
  %v238 = vunpack.c.h.b16 %v148
  %v239 = vunpack.c.l.b16 %v149
  %v240 = vunpack.c.h.b16 %v149
  %v241 = vunpack.c.l.b16 %v150
  %v242 = vunpack.c.h.b16 %v150
  %v243 = vunpack.c.l.b16 %v151
  %v244 = vunpack.c.h.b16 %v151
  %v245 = vunpack.c.l.b16 %v152
  %v246 = vunpack.c.h.b16 %v152
  %v247 = vunpack.c.l.b16 %v153
  %v248 = vunpack.c.h.b16 %v153
  %v249 = vunpack.c.l.b16 %v154
  %v250 = vunpack.c.h.b16 %v154
  %v251 = vpack.c.b16 %v189, %v187
  %v252 = vpack.c.b16 %v190, %v188
  %v253 = vpack.c.b16 %v193, %v191
  %v254 = vpack.c.b16 %v194, %v192
  %v255 = vpack.c.b16 %v197, %v195
  %v256 = vpack.c.b16 %v198, %v196
  %v257 = vpack.c.b16 %v201, %v199
  %v258 = vpack.c.b16 %v202, %v200
  %v259 = vpack.c.b16 %v205, %v203
  %v260 = vpack.c.b16 %v206, %v204
  %v261 = vpack.c.b16 %v209, %v207
  %v262 = vpack.c.b16 %v210, %v208
  %v263 = vpack.c.b16 %v213, %v211
  %v264 = vpack.c.b16 %v214, %v212
  %v265 = vpack.c.b16 %v217, %v215
  %v266 = vpack.c.b16 %v218, %v216
  %v267 = vpack.c.b16 %v221, %v219
  %v268 = vpack.c.b16 %v222, %v220
  %v269 = vpack.c.b16 %v225, %v223
  %v270 = vpack.c.b16 %v226, %v224
  %v271 = vpack.c.b16 %v229, %v227
  %v272 = vpack.c.b16 %v230, %v228
  %v273 = vpack.c.b16 %v233, %v231
  %v274 = vpack.c.b16 %v234, %v232
  %v275 = vpack.c.b16 %v237, %v235
  %v276 = vpack.c.b16 %v238, %v236
  %v277 = vpack.c.b16 %v241, %v239
  %v278 = vpack.c.b16 %v242, %v240
  %v279 = vpack.c.b16 %v245, %v243
  %v280 = vpack.c.b16 %v246, %v244
  %v281 = vpack.c.b16 %v249, %v247
  %v282 = vpack.c.b16 %v250, %v248
  %v347 = vunpack.c.l.b16 %v59
  %v348 = vunpack.c.l.b16 %v60
  %v349 = vunpack.c.l.b16 %v61
  %v350 = vunpack.c.l.b16 %v62
  %v351 = vunpack.c.l.b16 %v63
  %v352 = vunpack.c.l.b16 %v64
  %v353 = vunpack.c.l.b16 %v65
  %v354 = vunpack.c.l.b16 %v66
  %v355 = vunpack.c.l.b16 %v67
  %v356 = vunpack.c.l.b16 %v68
  %v357 = vunpack.c.l.b16 %v69
  %v358 = vunpack.c.l.b16 %v70
  %v359 = vunpack.c.l.b16 %v71
  %v360 = vunpack.c.l.b16 %v72
  %v361 = vunpack.c.l.b16 %v73
  %v362 = vunpack.c.l.b16 %v74
  %v363 = vunpack.c.l.b16 %v75
  %v364 = vunpack.c.l.b16 %v76
  %v365 = vunpack.c.l.b16 %v77
  %v366 = vunpack.c.l.b16 %v78
  %v367 = vunpack.c.l.b16 %v79
  %v368 = vunpack.c.l.b16 %v80
  %v369 = vunpack.c.l.b16 %v81
  %v370 = vunpack.c.l.b16 %v82
  %v371 = vunpack.c.l.b16 %v83
  %v372 = vunpack.c.l.b16 %v84
  %v373 = vunpack.c.l.b16 %v85
  %v374 = vunpack.c.l.b16 %v86
  %v375 = vunpack.c.l.b16 %v87
  %v376 = vunpack.c.l.b16 %v88
  %v377 = vunpack.c.l.b16 %v89
  %v378 = vunpack.c.l.b16 %v90
  %v379 = vpack.c.b16 %v348, %v347
  %v380 = vpack.c.b16 %v350, %v349
  %v381 = vpack.c.b16 %v352, %v351
  %v382 = vpack.c.b16 %v354, %v353
  %v383 = vpack.c.b16 %v356, %v355
  %v384 = vpack.c.b16 %v358, %v357
  %v385 = vpack.c.b16 %v360, %v359
  %v386 = vpack.c.b16 %v362, %v361
  %v387 = vpack.c.b16 %v364, %v363
  %v388 = vpack.c.b16 %v366, %v365
  %v389 = vpack.c.b16 %v368, %v367
  %v390 = vpack.c.b16 %v370, %v369
  %v391 = vpack.c.b16 %v372, %v371
  %v392 = vpack.c.b16 %v374, %v373
  %v393 = vpack.c.b16 %v376, %v375
  %v394 = vpack.c.b16 %v378, %v377
  %411 = vmatprep.subr.bf16.mxu0 0
  %412 = vmatpush1.bf16.msra.mxu0 %v379
  %413 = vmatprep.subr.bf16.mxu0 0
  %414 = vmatpush1.bf16.msra.mxu0 %v380
  %415 = vmatprep.subr.bf16.mxu0 0
  %416 = vmatpush1.bf16.msra.mxu0 %v381
  %417 = vmatprep.subr.bf16.mxu0 0
  %418 = vmatpush1.bf16.msra.mxu0 %v382
  %419 = vmatprep.subr.bf16.mxu0 0
  %420 = vmatpush1.bf16.msra.mxu0 %v383
  %421 = vmatprep.subr.bf16.mxu0 0
  %422 = vmatpush1.bf16.msra.mxu0 %v384
  %423 = vmatprep.subr.bf16.mxu0 0
  %424 = vmatpush1.bf16.msra.mxu0 %v385
  %425 = vmatprep.subr.bf16.mxu0 0
  %426 = vmatpush1.bf16.msra.mxu0 %v386
  %427 = vmatprep.subr.bf16.mxu0 0
  %428 = vmatpush1.bf16.msra.mxu0 %v387
  %429 = vmatprep.subr.bf16.mxu0 0
  %430 = vmatpush1.bf16.msra.mxu0 %v388
  %431 = vmatprep.subr.bf16.mxu0 0
  %432 = vmatpush1.bf16.msra.mxu0 %v389
  %433 = vmatprep.subr.bf16.mxu0 0
  %434 = vmatpush1.bf16.msra.mxu0 %v390
  %435 = vmatprep.subr.bf16.mxu0 0
  %436 = vmatpush1.bf16.msra.mxu0 %v391
  %437 = vmatprep.subr.bf16.mxu0 0
  %438 = vmatpush1.bf16.msra.mxu0 %v392
  %439 = vmatprep.subr.bf16.mxu0 0
  %440 = vmatpush1.bf16.msra.mxu0 %v393
  %441 = vmatprep.subr.bf16.mxu0 0
  %442 = vmatpush1.bf16.msra.mxu0 %v394
  %443 = vmatprep.mubr.bf16.mxu0 %v252
  %444 = vmatmul.mubr.bf16.gmra.mrb[0].mxu0 %v251
  %v445 = vpop.f32.mrb[0].mxu0
  %v446 = vadd.f32 0.0, %v445
  %v447 = vpop.f32.mrb[0].mxu0
  %v448 = vpop.f32.mrb[0].mxu0
  %v449 = vadd.f32 0.0, %v448
  %v450 = vpop.f32.mrb[0].mxu0
  %451 = vmatprep.mubr.bf16.mxu0 %v254
  %452 = vmatmul.mubr.bf16.gmra.mrb[0].mxu0 %v253
  %v453 = vpop.f32.mrb[0].mxu0
  %v454 = vadd.f32 0.0, %v453
  %v455 = vpop.f32.mrb[0].mxu0
  %v456 = vpop.f32.mrb[0].mxu0
  %v457 = vadd.f32 0.0, %v456
  %v458 = vpop.f32.mrb[0].mxu0
  %459 = vmatprep.mubr.bf16.mxu0 %v256
  %460 = vmatmul.mubr.bf16.gmra.mrb[0].mxu0 %v255
  %v461 = vpop.f32.mrb[0].mxu0
  %v462 = vadd.f32 0.0, %v461
  %v463 = vpop.f32.mrb[0].mxu0
  %v464 = vpop.f32.mrb[0].mxu0
  %v465 = vadd.f32 0.0, %v464
  %v466 = vpop.f32.mrb[0].mxu0
  %467 = vmatprep.mubr.bf16.mxu0 %v258
  %468 = vmatmul.mubr.bf16.gmra.mrb[0].mxu0 %v257
  %v469 = vpop.f32.mrb[0].mxu0
  %v470 = vadd.f32 0.0, %v469
  %v471 = vpop.f32.mrb[0].mxu0
  %v472 = vpop.f32.mrb[0].mxu0
  %v473 = vadd.f32 0.0, %v472
  %v474 = vpop.f32.mrb[0].mxu0
  %475 = vmatprep.mubr.bf16.mxu0 %v260
  %476 = vmatmul.mubr.bf16.gmra.mrb[0].mxu0 %v259
  %v477 = vpop.f32.mrb[0].mxu0
  %v478 = vadd.f32 0.0, %v477
  %v479 = vpop.f32.mrb[0].mxu0
  %v480 = vpop.f32.mrb[0].mxu0
  %v481 = vadd.f32 0.0, %v480
  %v482 = vpop.f32.mrb[0].mxu0
  %483 = vmatprep.mubr.bf16.mxu0 %v262
  %484 = vmatmul.mubr.bf16.gmra.mrb[0].mxu0 %v261
  %v485 = vpop.f32.mrb[0].mxu0
  %v486 = vadd.f32 0.0, %v485
  %v487 = vpop.f32.mrb[0].mxu0
  %v488 = vpop.f32.mrb[0].mxu0
  %v489 = vadd.f32 0.0, %v488
  %v490 = vpop.f32.mrb[0].mxu0
  %491 = vmatprep.mubr.bf16.mxu0 %v264
  %492 = vmatmul.mubr.bf16.gmra.mrb[0].mxu0 %v263
  %v493 = vpop.f32.mrb[0].mxu0
  %v494 = vadd.f32 0.0, %v493
  %v495 = vpop.f32.mrb[0].mxu0
  %v496 = vpop.f32.mrb[0].mxu0
  %v497 = vadd.f32 0.0, %v496
  %v498 = vpop.f32.mrb[0].mxu0
  %499 = vmatprep.mubr.bf16.mxu0 %v266
  %500 = vmatmul.mubr.bf16.gmra.mrb[0].mxu0 %v265
  %v501 = vpop.f32.mrb[0].mxu0
  %v502 = vadd.f32 0.0, %v501
  %v503 = vpop.f32.mrb[0].mxu0
  %v504 = vpop.f32.mrb[0].mxu0
  %v505 = vadd.f32 0.0, %v504
  %v506 = vpop.f32.mrb[0].mxu0
  %507 = vmatprep.mubr.bf16.mxu0 %v268
  %508 = vmatmul.mubr.bf16.gmra.mrb[0].mxu0 %v267
  %v509 = vpop.f32.mrb[0].mxu0
  %v510 = vadd.f32 0.0, %v509
  %v511 = vpop.f32.mrb[0].mxu0
  %v512 = vpop.f32.mrb[0].mxu0
  %v513 = vadd.f32 0.0, %v512
  %v514 = vpop.f32.mrb[0].mxu0
  %515 = vmatprep.mubr.bf16.mxu0 %v270
  %516 = vmatmul.mubr.bf16.gmra.mrb[0].mxu0 %v269
  %v517 = vpop.f32.mrb[0].mxu0
  %v518 = vadd.f32 0.0, %v517
  %v519 = vpop.f32.mrb[0].mxu0
  %v520 = vpop.f32.mrb[0].mxu0
  %v521 = vadd.f32 0.0, %v520
  %v522 = vpop.f32.mrb[0].mxu0
  %523 = vmatprep.mubr.bf16.mxu0 %v272
  %524 = vmatmul.mubr.bf16.gmra.mrb[0].mxu0 %v271
  %v525 = vpop.f32.mrb[0].mxu0
  %v526 = vadd.f32 0.0, %v525
  %v527 = vpop.f32.mrb[0].mxu0
  %v528 = vpop.f32.mrb[0].mxu0
  %v529 = vadd.f32 0.0, %v528
  %v530 = vpop.f32.mrb[0].mxu0
  %531 = vmatprep.mubr.bf16.mxu0 %v274
  %532 = vmatmul.mubr.bf16.gmra.mrb[0].mxu0 %v273
  %v533 = vpop.f32.mrb[0].mxu0
  %v534 = vadd.f32 0.0, %v533
  %v535 = vpop.f32.mrb[0].mxu0
  %v536 = vpop.f32.mrb[0].mxu0
  %v537 = vadd.f32 0.0, %v536
  %v538 = vpop.f32.mrb[0].mxu0
  %539 = vmatprep.mubr.bf16.mxu0 %v276
  %540 = vmatmul.mubr.bf16.gmra.mrb[0].mxu0 %v275
  %v541 = vpop.f32.mrb[0].mxu0
  %v542 = vadd.f32 0.0, %v541
  %v543 = vpop.f32.mrb[0].mxu0
  %v544 = vpop.f32.mrb[0].mxu0
  %v545 = vadd.f32 0.0, %v544
  %v546 = vpop.f32.mrb[0].mxu0
  %547 = vmatprep.mubr.bf16.mxu0 %v278
  %548 = vmatmul.mubr.bf16.gmra.mrb[0].mxu0 %v277
  %v549 = vpop.f32.mrb[0].mxu0
  %v550 = vadd.f32 0.0, %v549
  %v551 = vpop.f32.mrb[0].mxu0
  %v552 = vpop.f32.mrb[0].mxu0
  %v553 = vadd.f32 0.0, %v552
  %v554 = vpop.f32.mrb[0].mxu0
  %555 = vmatprep.mubr.bf16.mxu0 %v280
  %556 = vmatmul.mubr.bf16.gmra.mrb[0].mxu0 %v279
  %v557 = vpop.f32.mrb[0].mxu0
  %v558 = vadd.f32 0.0, %v557
  %v559 = vpop.f32.mrb[0].mxu0
  %v560 = vpop.f32.mrb[0].mxu0
  %v561 = vadd.f32 0.0, %v560
  %v562 = vpop.f32.mrb[0].mxu0
  %563 = vmatprep.mubr.bf16.mxu0 %v282
  %564 = vmatmul.mubr.bf16.gmra.mrb[0].mxu0 %v281
  %v565 = vpop.f32.mrb[0].mxu0
  %v566 = vadd.f32 0.0, %v565
  %v567 = vpop.f32.mrb[0].mxu0
  %v568 = vpop.f32.mrb[0].mxu0
  %v569 = vadd.f32 0.0, %v568
  %v570 = vpop.f32.mrb[0].mxu0
  %571 = vdwg.mxu0
  %v572 = vadd.f32 %v91, %v446
  %v573 = vadd.f32 %v92, %v449
  %v574 = vadd.f32 %v93, %v454
  %v575 = vadd.f32 %v94, %v457
  %v576 = vadd.f32 %v95, %v462
  %v577 = vadd.f32 %v96, %v465
  %v578 = vadd.f32 %v97, %v470
  %v579 = vadd.f32 %v98, %v473
  %v580 = vadd.f32 %v99, %v478
  %v581 = vadd.f32 %v100, %v481
  %v582 = vadd.f32 %v101, %v486
  %v583 = vadd.f32 %v102, %v489
  %v584 = vadd.f32 %v103, %v494
  %v585 = vadd.f32 %v104, %v497
  %v586 = vadd.f32 %v105, %v502
  %v587 = vadd.f32 %v106, %v505
  %v588 = vadd.f32 %v107, %v510
  %v589 = vadd.f32 %v108, %v513
  %v590 = vadd.f32 %v109, %v518
  %v591 = vadd.f32 %v110, %v521
  %v592 = vadd.f32 %v111, %v526
  %v593 = vadd.f32 %v112, %v529
  %v594 = vadd.f32 %v113, %v534
  %v595 = vadd.f32 %v114, %v537
  %v596 = vadd.f32 %v115, %v542
  %v597 = vadd.f32 %v116, %v545
  %v598 = vadd.f32 %v117, %v550
  %v599 = vadd.f32 %v118, %v553
  %v600 = vadd.f32 %v119, %v558
  %v601 = vadd.f32 %v120, %v561
  %v602 = vadd.f32 %v121, %v566
  %v603 = vadd.f32 %v122, %v569
  %604 = vst [vmem:[%s4] sm:$0xff] %v572
  %605 = vst [vmem:[%s4 + $0x8] sm:$0xff] %v573
  %606 = vst [vmem:[%s4 + $0x10] sm:$0xff] %v574
  %607 = vst [vmem:[%s4 + $0x18] sm:$0xff] %v575
  %608 = vst [vmem:[%s4 + $0x20] sm:$0xff] %v576
  %609 = vst [vmem:[%s4 + $0x28] sm:$0xff] %v577
  %610 = vst [vmem:[%s4 + $0x30] sm:$0xff] %v578
  %611 = vst [vmem:[%s4 + $0x38] sm:$0xff] %v579
  %612 = vst [vmem:[%s4 + $0x40] sm:$0xff] %v580
  %613 = vst [vmem:[%s4 + $0x48] sm:$0xff] %v581
  %614 = vst [vmem:[%s4 + $0x50] sm:$0xff] %v582
  %615 = vst [vmem:[%s4 + $0x58] sm:$0xff] %v583
  %616 = vst [vmem:[%s4 + $0x60] sm:$0xff] %v584
  %617 = vst [vmem:[%s4 + $0x68] sm:$0xff] %v585
  %618 = vst [vmem:[%s4 + $0x70] sm:$0xff] %v586
  %619 = vst [vmem:[%s4 + $0x78] sm:$0xff] %v587
  %620 = vst [vmem:[%s4 + $0x80] sm:$0xff] %v588
  %621 = vst [vmem:[%s4 + $0x88] sm:$0xff] %v589
  %622 = vst [vmem:[%s4 + $0x90] sm:$0xff] %v590
  %623 = vst [vmem:[%s4 + $0x98] sm:$0xff] %v591
  %624 = vst [vmem:[%s4 + $0xa0] sm:$0xff] %v592
  %625 = vst [vmem:[%s4 + $0xa8] sm:$0xff] %v593
  %626 = vst [vmem:[%s4 + $0xb0] sm:$0xff] %v594
  %627 = vst [vmem:[%s4 + $0xb8] sm:$0xff] %v595
  %628 = vst [vmem:[%s4 + $0xc0] sm:$0xff] %v596
  %629 = vst [vmem:[%s4 + $0xc8] sm:$0xff] %v597
  %630 = vst [vmem:[%s4 + $0xd0] sm:$0xff] %v598
  %631 = vst [vmem:[%s4 + $0xd8] sm:$0xff] %v599
  %632 = vst [vmem:[%s4 + $0xe0] sm:$0xff] %v600
  %633 = vst [vmem:[%s4 + $0xe8] sm:$0xff] %v601
  %634 = vst [vmem:[%s4 + $0xf0] sm:$0xff] %v602
  %635 = vst [vmem:[%s4 + $0xf8] sm:$0xff] %v603
  // Predicated region
  $region22: #{gcn_module_forward.7} parent=0 // pred_check
    %p636 = pneg %p18
  $region23: #{gcn_module_forward.7} parent=0 // pred_check_branch
    %638 = sbr.rel (%p636) target = $region25
  $region24: #{gcn_module_forward.7} parent=0 // pred_region
    %v639 = vld [vmem:[%s4] sm:$0xff]
    %v640 = vld [vmem:[%s4 + $0x8] sm:$0xff]
    %v641 = vld [vmem:[%s4 + $0x10] sm:$0xff]
    %v642 = vld [vmem:[%s4 + $0x18] sm:$0xff]
    %v643 = vld [vmem:[%s4 + $0x20] sm:$0xff]
    %v644 = vld [vmem:[%s4 + $0x28] sm:$0xff]
    %v645 = vld [vmem:[%s4 + $0x30] sm:$0xff]
    %v646 = vld [vmem:[%s4 + $0x38] sm:$0xff]
    %v647 = vld [vmem:[%s4 + $0x40] sm:$0xff]
    %v648 = vld [vmem:[%s4 + $0x48] sm:$0xff]
    %v649 = vld [vmem:[%s4 + $0x50] sm:$0xff]
    %v650 = vld [vmem:[%s4 + $0x58] sm:$0xff]
    %v651 = vld [vmem:[%s4 + $0x60] sm:$0xff]
    %v652 = vld [vmem:[%s4 + $0x68] sm:$0xff]
    %v653 = vld [vmem:[%s4 + $0x70] sm:$0xff]
    %v654 = vld [vmem:[%s4 + $0x78] sm:$0xff]
    %v655 = vld [vmem:[%s4 + $0x80] sm:$0xff]
    %v656 = vld [vmem:[%s4 + $0x88] sm:$0xff]
    %v657 = vld [vmem:[%s4 + $0x90] sm:$0xff]
    %v658 = vld [vmem:[%s4 + $0x98] sm:$0xff]
    %v659 = vld [vmem:[%s4 + $0xa0] sm:$0xff]
    %v660 = vld [vmem:[%s4 + $0xa8] sm:$0xff]
    %v661 = vld [vmem:[%s4 + $0xb0] sm:$0xff]
    %v662 = vld [vmem:[%s4 + $0xb8] sm:$0xff]
    %v663 = vld [vmem:[%s4 + $0xc0] sm:$0xff]
    %v664 = vld [vmem:[%s4 + $0xc8] sm:$0xff]
    %v665 = vld [vmem:[%s4 + $0xd0] sm:$0xff]
    %v666 = vld [vmem:[%s4 + $0xd8] sm:$0xff]
    %v667 = vld [vmem:[%s4 + $0xe0] sm:$0xff]
    %v668 = vld [vmem:[%s4 + $0xe8] sm:$0xff]
    %v669 = vld [vmem:[%s4 + $0xf0] sm:$0xff]
    %v670 = vld [vmem:[%s4 + $0xf8] sm:$0xff]
    %v671 = vld [vmem:[%s2] sm:$0xff]
    %v672 = vld [vmem:[%s2 + $0x8] sm:$0xff]
    %v673 = vld [vmem:[%s2 + $0x10] sm:$0xff]
    %v674 = vld [vmem:[%s2 + $0x18] sm:$0xff]
    %v675 = vld [vmem:[%s2 + $0x20] sm:$0xff]
    %v676 = vld [vmem:[%s2 + $0x28] sm:$0xff]
    %v677 = vld [vmem:[%s2 + $0x30] sm:$0xff]
    %v678 = vld [vmem:[%s2 + $0x38] sm:$0xff]
    %v679 = vld [vmem:[%s2 + $0x40] sm:$0xff]
    %v680 = vld [vmem:[%s2 + $0x48] sm:$0xff]
    %v681 = vld [vmem:[%s2 + $0x50] sm:$0xff]
    %v682 = vld [vmem:[%s2 + $0x58] sm:$0xff]
    %v683 = vld [vmem:[%s2 + $0x60] sm:$0xff]
    %v684 = vld [vmem:[%s2 + $0x68] sm:$0xff]
    %v685 = vld [vmem:[%s2 + $0x70] sm:$0xff]
    %v686 = vld [vmem:[%s2 + $0x78] sm:$0xff]
    %v687 = vld [vmem:[%s2 + $0x80] sm:$0xff]
    %v688 = vld [vmem:[%s2 + $0x88] sm:$0xff]
    %v689 = vld [vmem:[%s2 + $0x90] sm:$0xff]
    %v690 = vld [vmem:[%s2 + $0x98] sm:$0xff]
    %v691 = vld [vmem:[%s2 + $0xa0] sm:$0xff]
    %v692 = vld [vmem:[%s2 + $0xa8] sm:$0xff]
    %v693 = vld [vmem:[%s2 + $0xb0] sm:$0xff]
    %v694 = vld [vmem:[%s2 + $0xb8] sm:$0xff]
    %v695 = vld [vmem:[%s2 + $0xc0] sm:$0xff]
    %v696 = vld [vmem:[%s2 + $0xc8] sm:$0xff]
    %v697 = vld [vmem:[%s2 + $0xd0] sm:$0xff]
    %v698 = vld [vmem:[%s2 + $0xd8] sm:$0xff]
    %v699 = vld [vmem:[%s2 + $0xe0] sm:$0xff]
    %v700 = vld [vmem:[%s2 + $0xe8] sm:$0xff]
    %v701 = vld [vmem:[%s2 + $0xf0] sm:$0xff]
    %v702 = vld [vmem:[%s2 + $0xf8] sm:$0xff]
    %v703 = vld [vmem:[%s3] sm:$0xff]
    %v704 = vld [vmem:[%s3 + $0x8] sm:$0xff]
    %v705 = vld [vmem:[%s3 + $0x10] sm:$0xff]
    %v706 = vld [vmem:[%s3 + $0x18] sm:$0xff]
    %v707 = vld [vmem:[%s3 + $0x20] sm:$0xff]
    %v708 = vld [vmem:[%s3 + $0x28] sm:$0xff]
    %v709 = vld [vmem:[%s3 + $0x30] sm:$0xff]
    %v710 = vld [vmem:[%s3 + $0x38] sm:$0xff]
    %v711 = vld [vmem:[%s3 + $0x40] sm:$0xff]
    %v712 = vld [vmem:[%s3 + $0x48] sm:$0xff]
    %v713 = vld [vmem:[%s3 + $0x50] sm:$0xff]
    %v714 = vld [vmem:[%s3 + $0x58] sm:$0xff]
    %v715 = vld [vmem:[%s3 + $0x60] sm:$0xff]
    %v716 = vld [vmem:[%s3 + $0x68] sm:$0xff]
    %v717 = vld [vmem:[%s3 + $0x70] sm:$0xff]
    %v718 = vld [vmem:[%s3 + $0x78] sm:$0xff]
    %v719 = vld [vmem:[%s3 + $0x80] sm:$0xff]
    %v720 = vld [vmem:[%s3 + $0x88] sm:$0xff]
    %v721 = vld [vmem:[%s3 + $0x90] sm:$0xff]
    %v722 = vld [vmem:[%s3 + $0x98] sm:$0xff]
    %v723 = vld [vmem:[%s3 + $0xa0] sm:$0xff]
    %v724 = vld [vmem:[%s3 + $0xa8] sm:$0xff]
    %v725 = vld [vmem:[%s3 + $0xb0] sm:$0xff]
    %v726 = vld [vmem:[%s3 + $0xb8] sm:$0xff]
    %v727 = vld [vmem:[%s3 + $0xc0] sm:$0xff]
    %v728 = vld [vmem:[%s3 + $0xc8] sm:$0xff]
    %v729 = vld [vmem:[%s3 + $0xd0] sm:$0xff]
    %v730 = vld [vmem:[%s3 + $0xd8] sm:$0xff]
    %v731 = vld [vmem:[%s3 + $0xe0] sm:$0xff]
    %v732 = vld [vmem:[%s3 + $0xe8] sm:$0xff]
    %v733 = vld [vmem:[%s3 + $0xf0] sm:$0xff]
    %v734 = vld [vmem:[%s3 + $0xf8] sm:$0xff]
    %v735 = vadd.f32 %v671, %v703
    %v736 = vadd.f32 %v672, %v704
    %v737 = vadd.f32 %v673, %v705
    %v738 = vadd.f32 %v674, %v706
    %v739 = vadd.f32 %v675, %v707
    %v740 = vadd.f32 %v676, %v708
    %v741 = vadd.f32 %v677, %v709
    %v742 = vadd.f32 %v678, %v710
    %v743 = vadd.f32 %v679, %v711
    %v744 = vadd.f32 %v680, %v712
    %v745 = vadd.f32 %v681, %v713
    %v746 = vadd.f32 %v682, %v714
    %v747 = vadd.f32 %v683, %v715
    %v748 = vadd.f32 %v684, %v716
    %v749 = vadd.f32 %v685, %v717
    %v750 = vadd.f32 %v686, %v718
    %v751 = vadd.f32 %v687, %v719
    %v752 = vadd.f32 %v688, %v720
    %v753 = vadd.f32 %v689, %v721
    %v754 = vadd.f32 %v690, %v722
    %v755 = vadd.f32 %v691, %v723
    %v756 = vadd.f32 %v692, %v724
    %v757 = vadd.f32 %v693, %v725
    %v758 = vadd.f32 %v694, %v726
    %v759 = vadd.f32 %v695, %v727
    %v760 = vadd.f32 %v696, %v728
    %v761 = vadd.f32 %v697, %v729
    %v762 = vadd.f32 %v698, %v730
    %v763 = vadd.f32 %v699, %v731
    %v764 = vadd.f32 %v700, %v732
    %v765 = vadd.f32 %v701, %v733
    %v766 = vadd.f32 %v702, %v734
    %v767 = vadd.f32 %v639, %v735
    %v768 = vadd.f32 %v640, %v736
    %v769 = vadd.f32 %v641, %v737
    %v770 = vadd.f32 %v642, %v738
    %v771 = vadd.f32 %v643, %v739
    %v772 = vadd.f32 %v644, %v740
    %v773 = vadd.f32 %v645, %v741
    %v774 = vadd.f32 %v646, %v742
    %v775 = vadd.f32 %v647, %v743
    %v776 = vadd.f32 %v648, %v744
    %v777 = vadd.f32 %v649, %v745
    %v778 = vadd.f32 %v650, %v746
    %v779 = vadd.f32 %v651, %v747
    %v780 = vadd.f32 %v652, %v748
    %v781 = vadd.f32 %v653, %v749
    %v782 = vadd.f32 %v654, %v750
    %v783 = vadd.f32 %v655, %v751
    %v784 = vadd.f32 %v656, %v752
    %v785 = vadd.f32 %v657, %v753
    %v786 = vadd.f32 %v658, %v754
    %v787 = vadd.f32 %v659, %v755
    %v788 = vadd.f32 %v660, %v756
    %v789 = vadd.f32 %v661, %v757
    %v790 = vadd.f32 %v662, %v758
    %v791 = vadd.f32 %v663, %v759
    %v792 = vadd.f32 %v664, %v760
    %v793 = vadd.f32 %v665, %v761
    %v794 = vadd.f32 %v666, %v762
    %v795 = vadd.f32 %v667, %v763
    %v796 = vadd.f32 %v668, %v764
    %v797 = vadd.f32 %v669, %v765
    %v798 = vadd.f32 %v670, %v766
    %799 = vst [vmem:[%s4] sm:$0xff] %v767
    %800 = vst [vmem:[%s4 + $0x8] sm:$0xff] %v768
    %801 = vst [vmem:[%s4 + $0x10] sm:$0xff] %v769
    %802 = vst [vmem:[%s4 + $0x18] sm:$0xff] %v770
    %803 = vst [vmem:[%s4 + $0x20] sm:$0xff] %v771
    %804 = vst [vmem:[%s4 + $0x28] sm:$0xff] %v772
    %805 = vst [vmem:[%s4 + $0x30] sm:$0xff] %v773
    %806 = vst [vmem:[%s4 + $0x38] sm:$0xff] %v774
    %807 = vst [vmem:[%s4 + $0x40] sm:$0xff] %v775
    %808 = vst [vmem:[%s4 + $0x48] sm:$0xff] %v776
    %809 = vst [vmem:[%s4 + $0x50] sm:$0xff] %v777
    %810 = vst [vmem:[%s4 + $0x58] sm:$0xff] %v778
    %811 = vst [vmem:[%s4 + $0x60] sm:$0xff] %v779
    %812 = vst [vmem:[%s4 + $0x68] sm:$0xff] %v780
    %813 = vst [vmem:[%s4 + $0x70] sm:$0xff] %v781
    %814 = vst [vmem:[%s4 + $0x78] sm:$0xff] %v782
    %815 = vst [vmem:[%s4 + $0x80] sm:$0xff] %v783
    %816 = vst [vmem:[%s4 + $0x88] sm:$0xff] %v784
    %817 = vst [vmem:[%s4 + $0x90] sm:$0xff] %v785
    %818 = vst [vmem:[%s4 + $0x98] sm:$0xff] %v786
    %819 = vst [vmem:[%s4 + $0xa0] sm:$0xff] %v787
    %820 = vst [vmem:[%s4 + $0xa8] sm:$0xff] %v788
    %821 = vst [vmem:[%s4 + $0xb0] sm:$0xff] %v789
    %822 = vst [vmem:[%s4 + $0xb8] sm:$0xff] %v790
    %823 = vst [vmem:[%s4 + $0xc0] sm:$0xff] %v791
    %824 = vst [vmem:[%s4 + $0xc8] sm:$0xff] %v792
    %825 = vst [vmem:[%s4 + $0xd0] sm:$0xff] %v793
    %826 = vst [vmem:[%s4 + $0xd8] sm:$0xff] %v794
    %827 = vst [vmem:[%s4 + $0xe0] sm:$0xff] %v795
    %828 = vst [vmem:[%s4 + $0xe8] sm:$0xff] %v796
    %829 = vst [vmem:[%s4 + $0xf0] sm:$0xff] %v797
    %830 = vst [vmem:[%s4 + $0xf8] sm:$0xff] %v798
  $region25: #{gcn_module_forward.7} parent=0 // pred_fallthru
    _
  // Predicated region
  $region26: #{gcn_module_forward.7} parent=0 // pred_check
    _
  $region27: #{gcn_module_forward.7} parent=0 // pred_check_branch
    %832 = sbr.rel (0) target = $region29
  $region28: #{gcn_module_forward.7} parent=0 // pred_region
    _
  $region29: #{gcn_module_forward.7} parent=0 // pred_fallthru
    _
  // Predicated region
  $region30: #{gcn_module_forward.7} parent=0 // pred_check
    _
  $region31: #{gcn_module_forward.7} parent=0 // pred_check_branch
    %834 = sbr.rel (0) target = $region33
  $region32: #{gcn_module_forward.7} parent=0 // pred_region
    _
  $region33: #{gcn_module_forward.7} parent=0 // pred_fallthru
    _

</llo_original>
